<compile_context>
chip_gen: v6e
topology: v6e:2x2x1
jax: 0.10.0
libtpu: 0.0.40
codegen_flags: <defaults>
</compile_context>

<pallas_src>
import functools
import math

import jax
import jax.numpy as jnp
from jax.experimental import pallas as pl
from jax.experimental.pallas import tpu as pltpu


LARGE_TILE = 512  # row/reduction tile for the K-tiled large-graph path


@functools.lru_cache(maxsize=None)
def _vmem_limit_bytes() -> int:
    """~75% of per-core VMEM capacity; conservative 48 MiB fallback."""
    try:
        cap = int(pltpu.get_tpu_info().vmem_capacity_bytes)
        return max(32 * 1024 * 1024, (cap * 3) // 4)
    except Exception:
        return 48 * 1024 * 1024


# ----------------------------------------------------------------------------
# Shared epilogue helper
# ----------------------------------------------------------------------------
def _log_softmax_masked(z, valid_n):
    """Row-wise log_softmax over the first `valid_n` lanes of f32 `z`."""
    col = jax.lax.broadcasted_iota(jnp.int32, z.shape, 1)
    masked = jnp.where(col < valid_n, z, -jnp.inf)
    m = jnp.max(masked, axis=-1, keepdims=True)
    lse = m + jnp.log(jnp.sum(jnp.exp(masked - m), axis=-1, keepdims=True))
    return z - lse


# ----------------------------------------------------------------------------
# Small-graph path: whole GCN forward in a single pallas_call
# ----------------------------------------------------------------------------
def _gcn_small_kernel(x_ref, adj_ref, w1_ref, w2_ref, b1_ref, b2_ref, o_ref,
                      *, valid_c):
    f32, bf16 = jnp.float32, jnp.bfloat16
    adj = adj_ref[...]                                           # (M, M) bf16

    # gc1: relu(adj @ (x @ W1) + b1)
    s1 = jnp.dot(x_ref[...], w1_ref[...],
                 preferred_element_type=f32).astype(bf16)        # (M, H)
    h = jnp.maximum(
        jnp.dot(adj, s1, preferred_element_type=f32) + b1_ref[...], 0.0)

    # TODO(synk): dropout is identity here (inference / eval semantics).

    # gc2: adj @ (h @ W2) + b2, then masked log_softmax over classes.
    s2 = jnp.dot(h.astype(bf16), w2_ref[...],
                 preferred_element_type=f32).astype(bf16)        # (M, C)
    z = jnp.dot(adj, s2, preferred_element_type=f32) + b2_ref[...]
    o_ref[...] = _log_softmax_masked(z, valid_c).astype(o_ref.dtype)


def _gcn_small(x_p, adj_p, w1_p, w2_p, b1_p, b2_p, *, valid_c):
    M, F = x_p.shape
    H = w1_p.shape[1]
    C = w2_p.shape[1]
    kernel = functools.partial(_gcn_small_kernel, valid_c=valid_c)
    return pl.pallas_call(
        kernel,
        out_shape=jax.ShapeDtypeStruct((M, C), jnp.float32),
        grid=(1,),
        in_specs=[
            pl.BlockSpec((M, F), lambda i: (0, 0)),
            pl.BlockSpec((M, M), lambda i: (0, 0)),
            pl.BlockSpec((F, H), lambda i: (0, 0)),
            pl.BlockSpec((H, C), lambda i: (0, 0)),
            pl.BlockSpec((1, H), lambda i: (0, 0)),
            pl.BlockSpec((1, C), lambda i: (0, 0)),
        ],
        out_specs=pl.BlockSpec((M, C), lambda i: (0, 0)),
        compiler_params=pltpu.CompilerParams(
            dimension_semantics=("arbitrary",),
            vmem_limit_bytes=_vmem_limit_bytes(),
        ),
    )(x_p, adj_p, w1_p, w2_p, b1_p, b2_p)


# ----------------------------------------------------------------------------
# Large-graph path: one fused (support + K-tiled aggregate) kernel per layer
#   out = act(adj @ (xin @ W) + b)
# ----------------------------------------------------------------------------
def _layer_kernel(adj_ref, xin_ref, w_ref, b_ref, o_ref, acc_ref,
                  *, act, valid_n):
    k = pl.program_id(1)

    @pl.when(k == 0)
    def _():
        acc_ref[...] = jnp.zeros_like(acc_ref)

    # Support tile for this K block: (tile_k, Kin) @ (Kin, N) -> (tile_k, N).
    s = jnp.dot(xin_ref[...], w_ref[...],
                preferred_element_type=jnp.float32).astype(jnp.bfloat16)
    # Aggregate partial sum: (tile_m, tile_k) @ (tile_k, N).
    acc_ref[...] += jnp.dot(adj_ref[...], s,
                            preferred_element_type=jnp.float32)

    @pl.when(k == pl.num_programs(1) - 1)
    def _():
        y = acc_ref[...] + b_ref[...]
        if act == "relu":
            y = jnp.maximum(y, 0.0)
        elif act == "log_softmax":
            y = _log_softmax_masked(y, valid_n)
        o_ref[...] = y.astype(o_ref.dtype)


def _gcn_layer_fused(adj_p, xin_p, w_p, b_p, *, act, valid_n, out_dtype,
                     tile_m, tile_k):
    M = adj_p.shape[0]
    Kin = xin_p.shape[1]
    N = w_p.shape[1]
    assert M % tile_m == 0 and M % tile_k == 0, (M, tile_m, tile_k)
    assert Kin % 128 == 0 and N % 128 == 0, (Kin, N)

    kernel = functools.partial(_layer_kernel, act=act, valid_n=valid_n)
    return pl.pallas_call(
        kernel,
        out_shape=jax.ShapeDtypeStruct((M, N), out_dtype),
        grid=(M // tile_m, M // tile_k),
        in_specs=[
            pl.BlockSpec((tile_m, tile_k), lambda i, k: (i, k)),  # adj
            pl.BlockSpec((tile_k, Kin), lambda i, k: (k, 0)),     # layer input
            pl.BlockSpec((Kin, N), lambda i, k: (0, 0)),          # weight
            pl.BlockSpec((1, N), lambda i, k: (0, 0)),            # bias
        ],
        out_specs=pl.BlockSpec((tile_m, N), lambda i, k: (i, 0)),
        scratch_shapes=[pltpu.VMEM((tile_m, N), jnp.float32)],
        compiler_params=pltpu.CompilerParams(
            dimension_semantics=("parallel", "arbitrary"),
            vmem_limit_bytes=_vmem_limit_bytes(),
        ),
    )(adj_p, xin_p, w_p, b_p)


# ----------------------------------------------------------------------------
# GCN forward (matches GCN.forward in the PyTorch spec, eval semantics)
# ----------------------------------------------------------------------------
def _round_up(v, m):
    return ((v + m - 1) // m) * m


def _pad2(a, rows, cols):
    return jnp.pad(a, ((0, rows - a.shape[0]), (0, cols - a.shape[1])))


def _use_small_path(M, F, H, C, budget):
    est = ((M * M + M * F + F * H + H * C) * 2      # bf16 resident operands
           + M * (H + C) * 12                       # f32+bf16 intermediates
           + M * C * 4 + (H + C) * 4)               # output + biases
    return est <= min(budget // 3, 16 * 1024 * 1024)


def gcn_forward(params, x, adj, *, force_large=False):
    """x: (n_nodes, nfeat) f32, adj: (n_nodes, n_nodes) f32 (dense normalized).

    Returns log_softmax logits (n_nodes, nclass), f32.
    """
    n_nodes, nfeat = x.shape
    nhid = params["w1"].shape[1]
    nclass = params["w2"].shape[1]

    F = _round_up(nfeat, 128)
    H = _round_up(nhid, 128)
    C = _round_up(nclass, 128)

    small = (not force_large) and _use_small_path(
        _round_up(n_nodes, 128), F, H, C, _vmem_limit_bytes())
    M = _round_up(n_nodes, 128 if small else LARGE_TILE)

    bf16, f32 = jnp.bfloat16, jnp.float32
    x_p = _pad2(x, M, F).astype(bf16)
    adj_p = _pad2(adj, M, M).astype(bf16)
    w1_p = _pad2(params["w1"], F, H).astype(bf16)
    w2_p = _pad2(params["w2"], H, C).astype(bf16)
    b1_p = jnp.pad(params["b1"], (0, H - nhid)).reshape(1, H).astype(f32)
    b2_p = jnp.pad(params["b2"], (0, C - nclass)).reshape(1, C).astype(f32)

    if small:
        # Single launch: everything resident in VMEM, only logits hit HBM.
        z = _gcn_small(x_p, adj_p, w1_p, w2_p, b1_p, b2_p, valid_c=nclass)
    else:
        tile = min(LARGE_TILE, M)
        # gc1: relu(adj @ (x @ W1) + b1), fused + K-tiled (2 launches total).
        h = _gcn_layer_fused(adj_p, x_p, w1_p, b1_p, act="relu", valid_n=H,
                             out_dtype=bf16, tile_m=tile, tile_k=tile)
        # TODO(synk): dropout is identity here (inference / eval semantics).
        # gc2: adj @ (h @ W2) + b2, then masked log_softmax over classes.
        z = _gcn_layer_fused(adj_p, h, w2_p, b2_p, act="log_softmax",
                             valid_n=nclass, out_dtype=f32,
                             tile_m=tile, tile_k=tile)

    return z[:n_nodes, :nclass]


# ----------------------------------------------------------------------------
# Parameter / input construction (deterministic, matching PyTorch init)
# ----------------------------------------------------------------------------
def init_gcn_params(key, nfeat, nhid, nclass):
    k1, k2, k3, k4 = jax.random.split(key, 4)
    stdv1 = 1.0 / math.sqrt(nhid)     # GraphConvolution.reset_parameters
    stdv2 = 1.0 / math.sqrt(nclass)
    return dict(
        w1=jax.random.uniform(k1, (nfeat, nhid), jnp.float32, -stdv1, stdv1),
        b1=jax.random.uniform(k2, (nhid,), jnp.float32, -stdv1, stdv1),
        w2=jax.random.uniform(k3, (nhid, nclass), jnp.float32, -stdv2, stdv2),
        b2=jax.random.uniform(k4, (nclass,), jnp.float32, -stdv2, stdv2),
    )


def make_normalized_adj(key, n, p=0.05):
    """Symmetric normalized adjacency with self loops: D^-1/2 (A + I) D^-1/2."""
    a = (jax.random.uniform(key, (n, n)) < p).astype(jnp.float32)
    a = jnp.minimum(a + a.T + jnp.eye(n, dtype=jnp.float32), 1.0)
    d_inv_sqrt = 1.0 / jnp.sqrt(jnp.sum(a, axis=1))
    return a * d_inv_sqrt[:, None] * d_inv_sqrt[None, :]


def reference_forward(params, x, adj):
    """Pure-JAX reference with the same bf16 rounding points as the kernels."""
    bf = lambda t: t.astype(jnp.bfloat16).astype(jnp.float32)
    s1 = bf(bf(x) @ bf(params["w1"]))
    h = bf(jnp.maximum(bf(adj) @ s1 + params["b1"], 0.0))
    s2 = bf(h @ bf(params["w2"]))
    z = bf(adj) @ s2 + params["b2"]
    return jax.nn.log_softmax(z, axis=1)


def _check(out, ref, n_nodes, nclass):
    assert out.shape == (n_nodes, nclass), out.shape
    assert out.dtype == jnp.float32
    assert bool(jnp.all(jnp.isfinite(out)))
    # log_softmax rows must exponentiate to probabilities summing to 1.
    assert bool(jnp.allclose(jnp.sum(jnp.exp(out), axis=1), 1.0, atol=1e-3))
    assert bool(jnp.allclose(out, ref, atol=0.1, rtol=0.1))


# ----------------------------------------------------------------------------
if __name__ == "__main__":
    key = jax.random.PRNGKey(0)
    nfeat, nhid, nclass = 100, 32, 7
    dropout = 0.5  # kept for spec fidelity; identity in eval mode

    # 1) Benchmarked small configuration -> single-launch fused path.
    n_nodes = 256
    params = init_gcn_params(jax.random.fold_in(key, 1), nfeat, nhid, nclass)
    x = jax.random.normal(jax.random.fold_in(key, 2), (n_nodes, nfeat), jnp.float32)
    adj = make_normalized_adj(jax.random.fold_in(key, 3), n_nodes)

    fwd = jax.jit(lambda xx, aa: gcn_forward(params, xx, aa))
    out = jax.block_until_ready(fwd(x, adj))
    _check(out, reference_forward(params, x, adj), n_nodes, nclass)

    # 2) Larger graph -> per-layer fused, K-tiled accumulator path.
    n2 = 1000
    params2 = init_gcn_params(jax.random.fold_in(key, 4), nfeat, nhid, nclass)
    x2 = jax.random.normal(jax.random.fold_in(key, 5), (n2, nfeat), jnp.float32)
    adj2 = make_normalized_adj(jax.random.fold_in(key, 6), n2, p=0.01)

    fwd_large = jax.jit(lambda xx, aa: gcn_forward(params2, xx, aa, force_large=True))
    out2 = jax.block_until_ready(fwd_large(x2, adj2))
    _check(out2, reference_forward(params2, x2, adj2), n2, nclass)

    print("KERNEL_OK")
</pallas_src>

<mosaic_0001>
module attributes {stable_mosaic.version = 11 : i64} {
  func.func @_gcn_small_kernel(%arg0: i32, %arg1: memref<256x128xbf16, #tpu.memory_space<vmem>>, %arg2: memref<256x256xbf16, #tpu.memory_space<vmem>>, %arg3: memref<128x128xbf16, #tpu.memory_space<vmem>>, %arg4: memref<128x128xbf16, #tpu.memory_space<vmem>>, %arg5: memref<1x128xf32, #tpu.memory_space<vmem>>, %arg6: memref<1x128xf32, #tpu.memory_space<vmem>>, %arg7: memref<256x128xf32, #tpu.memory_space<vmem>>) attributes {dimension_semantics = [#tpu.dimension_semantics<arbitrary>], iteration_bounds = array<i64: 1>, scalar_prefetch = 0 : i64, scratch_operands = 0 : i64, tpu.core_type = #tpu.core_type<tc>, window_params = [{pipeline_mode = #tpu.pipeline_mode<synchronous>, transform_indices = @transform_0, window_bounds = array<i64: 256, 128>}, {pipeline_mode = #tpu.pipeline_mode<synchronous>, transform_indices = @transform_1, window_bounds = array<i64: 256, 256>}, {pipeline_mode = #tpu.pipeline_mode<synchronous>, transform_indices = @transform_2, window_bounds = array<i64: 128, 128>}, {pipeline_mode = #tpu.pipeline_mode<synchronous>, transform_indices = @transform_3, window_bounds = array<i64: 128, 128>}, {pipeline_mode = #tpu.pipeline_mode<synchronous>, transform_indices = @transform_4, window_bounds = array<i64: 1, 128>}, {pipeline_mode = #tpu.pipeline_mode<synchronous>, transform_indices = @transform_5, window_bounds = array<i64: 1, 128>}, {pipeline_mode = #tpu.pipeline_mode<synchronous>, transform_indices = @transform_6, window_bounds = array<i64: 256, 128>}]} {
    %c0 = arith.constant 0 : index
    %c0_0 = arith.constant 0 : index
    %0 = vector.load %arg2[%c0, %c0_0] : memref<256x256xbf16, #tpu.memory_space<vmem>>, vector<256x256xbf16>
    %c0_1 = arith.constant 0 : index
    %c0_2 = arith.constant 0 : index
    %1 = vector.load %arg1[%c0_1, %c0_2] : memref<256x128xbf16, #tpu.memory_space<vmem>>, vector<256x128xbf16>
    %c0_3 = arith.constant 0 : index
    %c0_4 = arith.constant 0 : index
    %2 = vector.load %arg3[%c0_3, %c0_4] : memref<128x128xbf16, #tpu.memory_space<vmem>>, vector<128x128xbf16>
    %cst = arith.constant dense<0.000000e+00> : vector<256x128xf32>
    %3 = tpu.matmul %1, %2, %cst {dimension_numbers = #tpu.dot_dimension_numbers<[1], [0], [0], [1], [0, 0, 1, 1], [], []>} : vector<256x128xbf16>, vector<128x128xbf16>, vector<256x128xf32> -> vector<256x128xf32>
    %4 = arith.truncf %3 : vector<256x128xf32> to vector<256x128xbf16>
    %cst_5 = arith.constant dense<0.000000e+00> : vector<256x128xf32>
    %5 = tpu.matmul %0, %4, %cst_5 {dimension_numbers = #tpu.dot_dimension_numbers<[1], [0], [0], [1], [0, 0, 1, 1], [], []>} : vector<256x256xbf16>, vector<256x128xbf16>, vector<256x128xf32> -> vector<256x128xf32>
    %c0_6 = arith.constant 0 : index
    %c0_7 = arith.constant 0 : index
    %6 = vector.load %arg5[%c0_6, %c0_7] : memref<1x128xf32, #tpu.memory_space<vmem>>, vector<1x128xf32>
    %7 = vector.broadcast %6 : vector<1x128xf32> to vector<256x128xf32>
    %8 = arith.addf %5, %7 : vector<256x128xf32>
    %cst_8 = arith.constant 0.000000e+00 : f32
    %9 = vector.broadcast %cst_8 : f32 to vector<256x128xf32>
    %10 = arith.maximumf %8, %9 : vector<256x128xf32>
    %11 = arith.truncf %10 : vector<256x128xf32> to vector<256x128xbf16>
    %c0_9 = arith.constant 0 : index
    %c0_10 = arith.constant 0 : index
    %12 = vector.load %arg4[%c0_9, %c0_10] : memref<128x128xbf16, #tpu.memory_space<vmem>>, vector<128x128xbf16>
    %cst_11 = arith.constant dense<0.000000e+00> : vector<256x128xf32>
    %13 = tpu.matmul %11, %12, %cst_11 {dimension_numbers = #tpu.dot_dimension_numbers<[1], [0], [0], [1], [0, 0, 1, 1], [], []>} : vector<256x128xbf16>, vector<128x128xbf16>, vector<256x128xf32> -> vector<256x128xf32>
    %14 = arith.truncf %13 : vector<256x128xf32> to vector<256x128xbf16>
    %cst_12 = arith.constant dense<0.000000e+00> : vector<256x128xf32>
    %15 = tpu.matmul %0, %14, %cst_12 {dimension_numbers = #tpu.dot_dimension_numbers<[1], [0], [0], [1], [0, 0, 1, 1], [], []>} : vector<256x256xbf16>, vector<256x128xbf16>, vector<256x128xf32> -> vector<256x128xf32>
    %c0_13 = arith.constant 0 : index
    %c0_14 = arith.constant 0 : index
    %16 = vector.load %arg6[%c0_13, %c0_14] : memref<1x128xf32, #tpu.memory_space<vmem>>, vector<1x128xf32>
    %17 = vector.broadcast %16 : vector<1x128xf32> to vector<256x128xf32>
    %18 = arith.addf %15, %17 : vector<256x128xf32>
    %19 = tpu.iota {dimensions = array<i32: 1>} : vector<256x128xi32>
    %c7_i32 = arith.constant 7 : i32
    %20 = vector.broadcast %c7_i32 : i32 to vector<256x128xi32>
    %21 = arith.cmpi slt, %19, %20 : vector<256x128xi32>
    %cst_15 = arith.constant 0xFF800000 : f32
    %22 = vector.broadcast %cst_15 : f32 to vector<256x128xf32>
    %23 = arith.select %21, %18, %22 : vector<256x128xi1>, vector<256x128xf32>
    %cst_16 = arith.constant dense<0xFF800000> : vector<256xf32>
    %24 = vector.multi_reduction <maximumf>, %23, %cst_16 [1] : vector<256x128xf32> to vector<256xf32>
    %25 = vector.shape_cast %24 : vector<256xf32> to vector<256x1xf32>
    %26 = vector.broadcast %25 : vector<256x1xf32> to vector<256x128xf32>
    %27 = arith.subf %23, %26 : vector<256x128xf32>
    %28 = math.exp %27 : vector<256x128xf32>
    %cst_17 = arith.constant dense<0.000000e+00> : vector<256xf32>
    %29 = vector.multi_reduction <add>, %28, %cst_17 [1] : vector<256x128xf32> to vector<256xf32>
    %30 = vector.shape_cast %29 : vector<256xf32> to vector<256x1xf32>
    %31 = math.log %30 : vector<256x1xf32>
    %32 = arith.addf %25, %31 : vector<256x1xf32>
    %33 = vector.broadcast %32 : vector<256x1xf32> to vector<256x128xf32>
    %34 = arith.subf %18, %33 : vector<256x128xf32>
    %c0_18 = arith.constant 0 : index
    %c0_19 = arith.constant 0 : index
    %35 = vector.load %arg7[%c0_18, %c0_19] : memref<256x128xf32, #tpu.memory_space<vmem>>, vector<256x128xf32>
    tpu.vector_store %arg7[%c0_18, %c0_19], %34 {strides = array<i32>} : memref<256x128xf32, #tpu.memory_space<vmem>>, vector<256x128xf32>,
    return
  }
  func.func @transform_0(%arg0: i32) -> (i32, i32) {
    %c0_i32 = arith.constant 0 : i32
    %c0_i32_0 = arith.constant 0 : i32
    %c0_i32_1 = arith.constant 0 : i32
    return %c0_i32, %c0_i32_0 : i32, i32
  }
  func.func @transform_1(%arg0: i32) -> (i32, i32) {
    %c0_i32 = arith.constant 0 : i32
    %c0_i32_0 = arith.constant 0 : i32
    %c0_i32_1 = arith.constant 0 : i32
    return %c0_i32, %c0_i32_0 : i32, i32
  }
  func.func @transform_2(%arg0: i32) -> (i32, i32) {
    %c0_i32 = arith.constant 0 : i32
    %c0_i32_0 = arith.constant 0 : i32
    %c0_i32_1 = arith.constant 0 : i32
    return %c0_i32, %c0_i32_0 : i32, i32
  }
  func.func @transform_3(%arg0: i32) -> (i32, i32) {
    %c0_i32 = arith.constant 0 : i32
    %c0_i32_0 = arith.constant 0 : i32
    %c0_i32_1 = arith.constant 0 : i32
    return %c0_i32, %c0_i32_0 : i32, i32
  }
  func.func @transform_4(%arg0: i32) -> (i32, i32) {
    %c0_i32 = arith.constant 0 : i32
    %c0_i32_0 = arith.constant 0 : i32
    %c0_i32_1 = arith.constant 0 : i32
    return %c0_i32, %c0_i32_0 : i32, i32
  }
  func.func @transform_5(%arg0: i32) -> (i32, i32) {
    %c0_i32 = arith.constant 0 : i32
    %c0_i32_0 = arith.constant 0 : i32
    %c0_i32_1 = arith.constant 0 : i32
    return %c0_i32, %c0_i32_0 : i32, i32
  }
  func.func @transform_6(%arg0: i32) -> (i32, i32) {
    %c0_i32 = arith.constant 0 : i32
    %c0_i32_0 = arith.constant 0 : i32
    %c0_i32_1 = arith.constant 0 : i32
    return %c0_i32, %c0_i32_0 : i32, i32
  }
}

</mosaic_0001>

<llo_original>
// kernel: _lambda_.1
$region0: #{_lambda_.1}
  #allocation0 [shape = 'u32[]', space=smem, size = 0x4, offset = 0x4, fixed_abs, tag = 'smem constant byte address 0x4 - core index']
  #allocation1 [shape = 'u32[144,128]{1,0:T(1,128)}', space=vmem, size = 0x12000, scoped, tag = 'internal scratch']
  %s0 = inlined_call_operand.vmem [shape: bf16[256,128], index: 0, kind: input, shape index: {}]
  %s1 = inlined_call_operand.vmem [shape: bf16[256,256], index: 1, kind: input, shape index: {}]
  %s2 = inlined_call_operand.vmem [shape: bf16[128,128], index: 2, kind: input, shape index: {}]
  %s3 = inlined_call_operand.vmem [shape: bf16[128,128], index: 3, kind: input, shape index: {}]
  %s4 = inlined_call_operand.vmem [shape: f32[1,128], index: 4, kind: input, shape index: {}]
  %s5 = inlined_call_operand.vmem [shape: f32[1,128], index: 5, kind: input, shape index: {}]
  %s6 = inlined_call_operand.vmem [shape: f32[256,128], index: 6, kind: output, shape index: {}]
  %s7 = sld [smem:[#allocation0]]
  $region34: #{_lambda_.1} parent=0
    _
  %s9 = ssub.s32 1, %s7
  %s10 = scalar_select 0, %s9, %s7
  // Predicated region
  $region2: #{_lambda_.1} parent=0 // pred_check
    _
  $region3: #{_lambda_.1} parent=0 // pred_check_branch
    %12 = sbr.rel (0) target = $region5
  $region4: #{_lambda_.1} parent=0 // pred_region
    _
  $region5: #{_lambda_.1} parent=0 // pred_fallthru
    _
  // Predicated region
  $region6: #{_lambda_.1} parent=0 // pred_check
    _
  $region7: #{_lambda_.1} parent=0 // pred_check_branch
    %14 = sbr.rel (0) target = $region9
  $region8: #{_lambda_.1} parent=0 // pred_region
    _
  $region9: #{_lambda_.1} parent=0 // pred_fallthru
    _
  // Predicated region
  $region10: #{_lambda_.1} parent=0 // pred_check
    _
  $region11: #{_lambda_.1} parent=0 // pred_check_branch
    %16 = sbr.rel (0) target = $region13
  $region12: #{_lambda_.1} parent=0 // pred_region
    _
  $region13: #{_lambda_.1} parent=0 // pred_fallthru
    _
  // Predicated region
  $region14: #{_lambda_.1} parent=0 // pred_check
    _
  $region15: #{_lambda_.1} parent=0 // pred_check_branch
    %18 = sbr.rel (0) target = $region17
  $region16: #{_lambda_.1} parent=0 // pred_region
    _
  $region17: #{_lambda_.1} parent=0 // pred_fallthru
    _
  // Predicated region
  $region18: #{_lambda_.1} parent=0 // pred_check
    _
  $region19: #{_lambda_.1} parent=0 // pred_check_branch
    %20 = sbr.rel (0) target = $region21
  $region20: #{_lambda_.1} parent=0 // pred_region
    _
  $region21: #{_lambda_.1} parent=0 // pred_fallthru
    _
  // Predicated region
  $region22: #{_lambda_.1} parent=0 // pred_check
    _
  $region23: #{_lambda_.1} parent=0 // pred_check_branch
    %22 = sbr.rel (0) target = $region25
  $region24: #{_lambda_.1} parent=0 // pred_region
    _
  $region25: #{_lambda_.1} parent=0 // pred_fallthru
    _
  %v24 = vld [vmem:[%s1] sm:$0xff]
  %v25 = vld [vmem:[%s1 + $0x8] sm:$0xff]
  %v26 = vld [vmem:[%s1 + $0x10] sm:$0xff]
  %v27 = vld [vmem:[%s1 + $0x18] sm:$0xff]
  %v28 = vld [vmem:[%s1 + $0x20] sm:$0xff]
  %v29 = vld [vmem:[%s1 + $0x28] sm:$0xff]
  %v30 = vld [vmem:[%s1 + $0x30] sm:$0xff]
  %v31 = vld [vmem:[%s1 + $0x38] sm:$0xff]
  %v32 = vld [vmem:[%s1 + $0x40] sm:$0xff]
  %v33 = vld [vmem:[%s1 + $0x48] sm:$0xff]
  %v34 = vld [vmem:[%s1 + $0x50] sm:$0xff]
  %v35 = vld [vmem:[%s1 + $0x58] sm:$0xff]
  %v36 = vld [vmem:[%s1 + $0x60] sm:$0xff]
  %v37 = vld [vmem:[%s1 + $0x68] sm:$0xff]
  %v38 = vld [vmem:[%s1 + $0x70] sm:$0xff]
  %v39 = vld [vmem:[%s1 + $0x78] sm:$0xff]
  %v40 = vld [vmem:[%s1 + $0x80] sm:$0xff]
  %v41 = vld [vmem:[%s1 + $0x88] sm:$0xff]
  %v42 = vld [vmem:[%s1 + $0x90] sm:$0xff]
  %v43 = vld [vmem:[%s1 + $0x98] sm:$0xff]
  %v44 = vld [vmem:[%s1 + $0xa0] sm:$0xff]
  %v45 = vld [vmem:[%s1 + $0xa8] sm:$0xff]
  %v46 = vld [vmem:[%s1 + $0xb0] sm:$0xff]
  %v47 = vld [vmem:[%s1 + $0xb8] sm:$0xff]
  %v48 = vld [vmem:[%s1 + $0xc0] sm:$0xff]
  %v49 = vld [vmem:[%s1 + $0xc8] sm:$0xff]
  %v50 = vld [vmem:[%s1 + $0xd0] sm:$0xff]
  %v51 = vld [vmem:[%s1 + $0xd8] sm:$0xff]
  %v52 = vld [vmem:[%s1 + $0xe0] sm:$0xff]
  %v53 = vld [vmem:[%s1 + $0xe8] sm:$0xff]
  %v54 = vld [vmem:[%s1 + $0xf0] sm:$0xff]
  %v55 = vld [vmem:[%s1 + $0xf8] sm:$0xff]
  %v56 = vld [vmem:[%s0] sm:$0xf]
  %v57 = vld [vmem:[%s0 + $0x4] sm:$0xf]
  %v58 = vld [vmem:[%s0 + $0x8] sm:$0xf]
  %v59 = vld [vmem:[%s0 + $0xc] sm:$0xf]
  %v60 = vld [vmem:[%s0 + $0x10] sm:$0xf]
  %v61 = vld [vmem:[%s0 + $0x14] sm:$0xf]
  %v62 = vld [vmem:[%s0 + $0x18] sm:$0xf]
  %v63 = vld [vmem:[%s0 + $0x1c] sm:$0xf]
  %v64 = vld [vmem:[%s0 + $0x20] sm:$0xf]
  %v65 = vld [vmem:[%s0 + $0x24] sm:$0xf]
  %v66 = vld [vmem:[%s0 + $0x28] sm:$0xf]
  %v67 = vld [vmem:[%s0 + $0x2c] sm:$0xf]
  %v68 = vld [vmem:[%s0 + $0x30] sm:$0xf]
  %v69 = vld [vmem:[%s0 + $0x34] sm:$0xf]
  %v70 = vld [vmem:[%s0 + $0x38] sm:$0xf]
  %v71 = vld [vmem:[%s0 + $0x3c] sm:$0xf]
  %v72 = vld [vmem:[%s0 + $0x40] sm:$0xf]
  %v73 = vld [vmem:[%s0 + $0x44] sm:$0xf]
  %v74 = vld [vmem:[%s0 + $0x48] sm:$0xf]
  %v75 = vld [vmem:[%s0 + $0x4c] sm:$0xf]
  %v76 = vld [vmem:[%s0 + $0x50] sm:$0xf]
  %v77 = vld [vmem:[%s0 + $0x54] sm:$0xf]
  %v78 = vld [vmem:[%s0 + $0x58] sm:$0xf]
  %v79 = vld [vmem:[%s0 + $0x5c] sm:$0xf]
  %v80 = vld [vmem:[%s0 + $0x60] sm:$0xf]
  %v81 = vld [vmem:[%s0 + $0x64] sm:$0xf]
  %v82 = vld [vmem:[%s0 + $0x68] sm:$0xf]
  %v83 = vld [vmem:[%s0 + $0x6c] sm:$0xf]
  %v84 = vld [vmem:[%s0 + $0x70] sm:$0xf]
  %v85 = vld [vmem:[%s0 + $0x74] sm:$0xf]
  %v86 = vld [vmem:[%s0 + $0x78] sm:$0xf]
  %v87 = vld [vmem:[%s0 + $0x7c] sm:$0xf]
  %v88 = vld [vmem:[%s2] sm:$0xf]
  %v89 = vld [vmem:[%s2 + $0x4] sm:$0xf]
  %v90 = vld [vmem:[%s2 + $0x8] sm:$0xf]
  %v91 = vld [vmem:[%s2 + $0xc] sm:$0xf]
  %v92 = vld [vmem:[%s2 + $0x10] sm:$0xf]
  %v93 = vld [vmem:[%s2 + $0x14] sm:$0xf]
  %v94 = vld [vmem:[%s2 + $0x18] sm:$0xf]
  %v95 = vld [vmem:[%s2 + $0x1c] sm:$0xf]
  %v96 = vld [vmem:[%s2 + $0x20] sm:$0xf]
  %v97 = vld [vmem:[%s2 + $0x24] sm:$0xf]
  %v98 = vld [vmem:[%s2 + $0x28] sm:$0xf]
  %v99 = vld [vmem:[%s2 + $0x2c] sm:$0xf]
  %v100 = vld [vmem:[%s2 + $0x30] sm:$0xf]
  %v101 = vld [vmem:[%s2 + $0x34] sm:$0xf]
  %v102 = vld [vmem:[%s2 + $0x38] sm:$0xf]
  %v103 = vld [vmem:[%s2 + $0x3c] sm:$0xf]
  %v136 = vunpack.c.l.b16 %v56
  %v137 = vunpack.c.l.b16 %v57
  %v138 = vunpack.c.l.b16 %v58
  %v139 = vunpack.c.l.b16 %v59
  %v140 = vunpack.c.l.b16 %v60
  %v141 = vunpack.c.l.b16 %v61
  %v142 = vunpack.c.l.b16 %v62
  %v143 = vunpack.c.l.b16 %v63
  %v144 = vunpack.c.l.b16 %v64
  %v145 = vunpack.c.l.b16 %v65
  %v146 = vunpack.c.l.b16 %v66
  %v147 = vunpack.c.l.b16 %v67
  %v148 = vunpack.c.l.b16 %v68
  %v149 = vunpack.c.l.b16 %v69
  %v150 = vunpack.c.l.b16 %v70
  %v151 = vunpack.c.l.b16 %v71
  %v152 = vunpack.c.l.b16 %v72
  %v153 = vunpack.c.l.b16 %v73
  %v154 = vunpack.c.l.b16 %v74
  %v155 = vunpack.c.l.b16 %v75
  %v156 = vunpack.c.l.b16 %v76
  %v157 = vunpack.c.l.b16 %v77
  %v158 = vunpack.c.l.b16 %v78
  %v159 = vunpack.c.l.b16 %v79
  %v160 = vunpack.c.l.b16 %v80
  %v161 = vunpack.c.l.b16 %v81
  %v162 = vunpack.c.l.b16 %v82
  %v163 = vunpack.c.l.b16 %v83
  %v164 = vunpack.c.l.b16 %v84
  %v165 = vunpack.c.l.b16 %v85
  %v166 = vunpack.c.l.b16 %v86
  %v167 = vunpack.c.l.b16 %v87
  %v168 = vpack.c.b16 %v137, %v136
  %v169 = vpack.c.b16 %v139, %v138
  %v170 = vpack.c.b16 %v141, %v140
  %v171 = vpack.c.b16 %v143, %v142
  %v172 = vpack.c.b16 %v145, %v144
  %v173 = vpack.c.b16 %v147, %v146
  %v174 = vpack.c.b16 %v149, %v148
  %v175 = vpack.c.b16 %v151, %v150
  %v176 = vpack.c.b16 %v153, %v152
  %v177 = vpack.c.b16 %v155, %v154
  %v178 = vpack.c.b16 %v157, %v156
  %v179 = vpack.c.b16 %v159, %v158
  %v180 = vpack.c.b16 %v161, %v160
  %v181 = vpack.c.b16 %v163, %v162
  %v182 = vpack.c.b16 %v165, %v164
  %v183 = vpack.c.b16 %v167, %v166
  %v216 = vunpack.c.l.b16 %v88
  %v217 = vunpack.c.l.b16 %v89
  %v218 = vunpack.c.l.b16 %v90
  %v219 = vunpack.c.l.b16 %v91
  %v220 = vunpack.c.l.b16 %v92
  %v221 = vunpack.c.l.b16 %v93
  %v222 = vunpack.c.l.b16 %v94
  %v223 = vunpack.c.l.b16 %v95
  %v224 = vunpack.c.l.b16 %v96
  %v225 = vunpack.c.l.b16 %v97
  %v226 = vunpack.c.l.b16 %v98
  %v227 = vunpack.c.l.b16 %v99
  %v228 = vunpack.c.l.b16 %v100
  %v229 = vunpack.c.l.b16 %v101
  %v230 = vunpack.c.l.b16 %v102
  %v231 = vunpack.c.l.b16 %v103
  %v232 = vpack.c.b16 %v217, %v216
  %v233 = vpack.c.b16 %v219, %v218
  %v234 = vpack.c.b16 %v221, %v220
  %v235 = vpack.c.b16 %v223, %v222
  %v236 = vpack.c.b16 %v225, %v224
  %v237 = vpack.c.b16 %v227, %v226
  %v238 = vpack.c.b16 %v229, %v228
  %v239 = vpack.c.b16 %v231, %v230
  %248 = vmatprep.subr.bf16.mxu0 0
  %249 = vmatpush1.bf16.msra.mxu0 %v239
  %250 = vmatprep.subr.bf16.mxu0 0
  %251 = vmatpush1.bf16.msra.mxu0 %v238
  %252 = vmatprep.subr.bf16.mxu0 0
  %253 = vmatpush1.bf16.msra.mxu0 %v237
  %254 = vmatprep.subr.bf16.mxu0 0
  %255 = vmatpush1.bf16.msra.mxu0 %v236
  %256 = vmatprep.subr.bf16.mxu0 0
  %257 = vmatpush1.bf16.msra.mxu0 %v235
  %258 = vmatprep.subr.bf16.mxu0 0
  %259 = vmatpush1.bf16.msra.mxu0 %v234
  %260 = vmatprep.subr.bf16.mxu0 0
  %261 = vmatpush1.bf16.msra.mxu0 %v233
  %262 = vmatprep.subr.bf16.mxu0 0
  %263 = vmatpush1.bf16.msra.mxu0 %v232
  %264 = vmatprep.subr.bf16.mxu0 0
  %265 = vmatpush2.bf16.msra.mxu0 0
  %266 = vmatprep.subr.bf16.mxu0 0
  %267 = vmatpush2.bf16.msra.mxu0 0
  %268 = vmatprep.subr.bf16.mxu0 0
  %269 = vmatpush2.bf16.msra.mxu0 0
  %270 = vmatprep.subr.bf16.mxu0 0
  %271 = vmatpush2.bf16.msra.mxu0 0
  %272 = vmatprep.subr.bf16.mxu0 0
  %273 = vmatpush2.bf16.msra.mxu0 0
  %274 = vmatprep.subr.bf16.mxu0 0
  %275 = vmatpush2.bf16.msra.mxu0 0
  %276 = vmatprep.subr.bf16.mxu0 0
  %277 = vmatpush2.bf16.msra.mxu0 0
  %278 = vmatprep.subr.bf16.mxu0 0
  %279 = vmatpush2.bf16.msra.mxu0 0
  %280 = vmatprep.mubr.bf16.mxu0 0
  %281 = vmatmul.mubr.bf16.gmra.mxu0 %v168
  %v282 = vpop.f32.mrf.mxu0
  %v283 = vadd.f32 0.0, %v282
  %v284 = vpop.f32.mrf.mxu0
  %v285 = vpop.f32.mrf.mxu0
  %v286 = vadd.f32 0.0, %v285
  %v287 = vpop.f32.mrf.mxu0
  %288 = vmatprep.mubr.bf16.mxu0 0
  %289 = vmatmul.mubr.bf16.gmra.mxu0 %v169
  %v290 = vpop.f32.mrf.mxu0
  %v291 = vadd.f32 0.0, %v290
  %v292 = vpop.f32.mrf.mxu0
  %v293 = vpop.f32.mrf.mxu0
  %v294 = vadd.f32 0.0, %v293
  %v295 = vpop.f32.mrf.mxu0
  %296 = vmatprep.mubr.bf16.mxu0 0
  %297 = vmatmul.mubr.bf16.gmra.mxu0 %v170
  %v298 = vpop.f32.mrf.mxu0
  %v299 = vadd.f32 0.0, %v298
  %v300 = vpop.f32.mrf.mxu0
  %v301 = vpop.f32.mrf.mxu0
  %v302 = vadd.f32 0.0, %v301
  %v303 = vpop.f32.mrf.mxu0
  %304 = vmatprep.mubr.bf16.mxu0 0
  %305 = vmatmul.mubr.bf16.gmra.mxu0 %v171
  %v306 = vpop.f32.mrf.mxu0
  %v307 = vadd.f32 0.0, %v306
  %v308 = vpop.f32.mrf.mxu0
  %v309 = vpop.f32.mrf.mxu0
  %v310 = vadd.f32 0.0, %v309
  %v311 = vpop.f32.mrf.mxu0
  %312 = vmatprep.mubr.bf16.mxu0 0
  %313 = vmatmul.mubr.bf16.gmra.mxu0 %v172
  %v314 = vpop.f32.mrf.mxu0
  %v315 = vadd.f32 0.0, %v314
  %v316 = vpop.f32.mrf.mxu0
  %v317 = vpop.f32.mrf.mxu0
  %v318 = vadd.f32 0.0, %v317
  %v319 = vpop.f32.mrf.mxu0
  %320 = vmatprep.mubr.bf16.mxu0 0
  %321 = vmatmul.mubr.bf16.gmra.mxu0 %v173
  %v322 = vpop.f32.mrf.mxu0
  %v323 = vadd.f32 0.0, %v322
  %v324 = vpop.f32.mrf.mxu0
  %v325 = vpop.f32.mrf.mxu0
  %v326 = vadd.f32 0.0, %v325
  %v327 = vpop.f32.mrf.mxu0
  %328 = vmatprep.mubr.bf16.mxu0 0
  %329 = vmatmul.mubr.bf16.gmra.mxu0 %v174
  %v330 = vpop.f32.mrf.mxu0
  %v331 = vadd.f32 0.0, %v330
  %v332 = vpop.f32.mrf.mxu0
  %v333 = vpop.f32.mrf.mxu0
  %v334 = vadd.f32 0.0, %v333
  %v335 = vpop.f32.mrf.mxu0
  %336 = vmatprep.mubr.bf16.mxu0 0
  %337 = vmatmul.mubr.bf16.gmra.mxu0 %v175
  %v338 = vpop.f32.mrf.mxu0
  %v339 = vadd.f32 0.0, %v338
  %v340 = vpop.f32.mrf.mxu0
  %v341 = vpop.f32.mrf.mxu0
  %v342 = vadd.f32 0.0, %v341
  %v343 = vpop.f32.mrf.mxu0
  %344 = vmatprep.mubr.bf16.mxu0 0
  %345 = vmatmul.mubr.bf16.gmra.mxu0 %v176
  %v346 = vpop.f32.mrf.mxu0
  %v347 = vadd.f32 0.0, %v346
  %v348 = vpop.f32.mrf.mxu0
  %v349 = vpop.f32.mrf.mxu0
  %v350 = vadd.f32 0.0, %v349
  %v351 = vpop.f32.mrf.mxu0
  %352 = vmatprep.mubr.bf16.mxu0 0
  %353 = vmatmul.mubr.bf16.gmra.mxu0 %v177
  %v354 = vpop.f32.mrf.mxu0
  %v355 = vadd.f32 0.0, %v354
  %v356 = vpop.f32.mrf.mxu0
  %v357 = vpop.f32.mrf.mxu0
  %v358 = vadd.f32 0.0, %v357
  %v359 = vpop.f32.mrf.mxu0
  %360 = vmatprep.mubr.bf16.mxu0 0
  %361 = vmatmul.mubr.bf16.gmra.mxu0 %v178
  %v362 = vpop.f32.mrf.mxu0
  %v363 = vadd.f32 0.0, %v362
  %v364 = vpop.f32.mrf.mxu0
  %v365 = vpop.f32.mrf.mxu0
  %v366 = vadd.f32 0.0, %v365
  %v367 = vpop.f32.mrf.mxu0
  %368 = vmatprep.mubr.bf16.mxu0 0
  %369 = vmatmul.mubr.bf16.gmra.mxu0 %v179
  %v370 = vpop.f32.mrf.mxu0
  %v371 = vadd.f32 0.0, %v370
  %v372 = vpop.f32.mrf.mxu0
  %v373 = vpop.f32.mrf.mxu0
  %v374 = vadd.f32 0.0, %v373
  %v375 = vpop.f32.mrf.mxu0
  %376 = vmatprep.mubr.bf16.mxu0 0
  %377 = vmatmul.mubr.bf16.gmra.mxu0 %v180
  %v378 = vpop.f32.mrf.mxu0
  %v379 = vadd.f32 0.0, %v378
  %v380 = vpop.f32.mrf.mxu0
  %v381 = vpop.f32.mrf.mxu0
  %v382 = vadd.f32 0.0, %v381
  %v383 = vpop.f32.mrf.mxu0
  %384 = vmatprep.mubr.bf16.mxu0 0
  %385 = vmatmul.mubr.bf16.gmra.mxu0 %v181
  %v386 = vpop.f32.mrf.mxu0
  %v387 = vadd.f32 0.0, %v386
  %v388 = vpop.f32.mrf.mxu0
  %v389 = vpop.f32.mrf.mxu0
  %v390 = vadd.f32 0.0, %v389
  %v391 = vpop.f32.mrf.mxu0
  %392 = vmatprep.mubr.bf16.mxu0 0
  %393 = vmatmul.mubr.bf16.gmra.mxu0 %v182
  %v394 = vpop.f32.mrf.mxu0
  %v395 = vadd.f32 0.0, %v394
  %v396 = vpop.f32.mrf.mxu0
  %v397 = vpop.f32.mrf.mxu0
  %v398 = vadd.f32 0.0, %v397
  %v399 = vpop.f32.mrf.mxu0
  %400 = vmatprep.mubr.bf16.mxu0 0
  %401 = vmatmul.mubr.bf16.gmra.mxu0 %v183
  %v402 = vpop.f32.mrf.mxu0
  %v403 = vadd.f32 0.0, %v402
  %v404 = vpop.f32.mrf.mxu0
  %v405 = vpop.f32.mrf.mxu0
  %v406 = vadd.f32 0.0, %v405
  %v407 = vpop.f32.mrf.mxu0
  %408 = vdwg.mxu0
  %v409 = vpack.c.bf16 %v286, %v283
  %v410 = vpack.c.bf16 %v294, %v291
  %v411 = vpack.c.bf16 %v302, %v299
  %v412 = vpack.c.bf16 %v310, %v307
  %v413 = vpack.c.bf16 %v318, %v315
  %v414 = vpack.c.bf16 %v326, %v323
  %v415 = vpack.c.bf16 %v334, %v331
  %v416 = vpack.c.bf16 %v342, %v339
  %v417 = vpack.c.bf16 %v350, %v347
  %v418 = vpack.c.bf16 %v358, %v355
  %v419 = vpack.c.bf16 %v366, %v363
  %v420 = vpack.c.bf16 %v374, %v371
  %v421 = vpack.c.bf16 %v382, %v379
  %v422 = vpack.c.bf16 %v390, %v387
  %v423 = vpack.c.bf16 %v398, %v395
  %v424 = vpack.c.bf16 %v406, %v403
  %v425 = vld [vmem:[%s4] sm:$0x1]
  %v427 = vlaneseq
  %v428 = vshrl.u32 %v427, 7
  %v429 = vsub.s32 0, %v428
  %v430 = vrot.slane %v425, %v429
  %v464 = vunpack.c.l.b16 %v24
  %v465 = vunpack.c.h.b16 %v24
  %v466 = vunpack.c.l.b16 %v25
  %v467 = vunpack.c.h.b16 %v25
  %v468 = vunpack.c.l.b16 %v26
  %v469 = vunpack.c.h.b16 %v26
  %v470 = vunpack.c.l.b16 %v27
  %v471 = vunpack.c.h.b16 %v27
  %v472 = vunpack.c.l.b16 %v28
  %v473 = vunpack.c.h.b16 %v28
  %v474 = vunpack.c.l.b16 %v29
  %v475 = vunpack.c.h.b16 %v29
  %v476 = vunpack.c.l.b16 %v30
  %v477 = vunpack.c.h.b16 %v30
  %v478 = vunpack.c.l.b16 %v31
  %v479 = vunpack.c.h.b16 %v31
  %v480 = vunpack.c.l.b16 %v32
  %v481 = vunpack.c.h.b16 %v32
  %v482 = vunpack.c.l.b16 %v33
  %v483 = vunpack.c.h.b16 %v33
  %v484 = vunpack.c.l.b16 %v34
  %v485 = vunpack.c.h.b16 %v34
  %v486 = vunpack.c.l.b16 %v35
  %v487 = vunpack.c.h.b16 %v35
  %v488 = vunpack.c.l.b16 %v36
  %v489 = vunpack.c.h.b16 %v36
  %v490 = vunpack.c.l.b16 %v37
  %v491 = vunpack.c.h.b16 %v37
  %v492 = vunpack.c.l.b16 %v38
  %v493 = vunpack.c.h.b16 %v38
  %v494 = vunpack.c.l.b16 %v39
  %v495 = vunpack.c.h.b16 %v39
  %v496 = vunpack.c.l.b16 %v40
  %v497 = vunpack.c.h.b16 %v40
  %v498 = vunpack.c.l.b16 %v41
  %v499 = vunpack.c.h.b16 %v41
  %v500 = vunpack.c.l.b16 %v42
  %v501 = vunpack.c.h.b16 %v42
  %v502 = vunpack.c.l.b16 %v43
  %v503 = vunpack.c.h.b16 %v43
  %v504 = vunpack.c.l.b16 %v44
  %v505 = vunpack.c.h.b16 %v44
  %v506 = vunpack.c.l.b16 %v45
  %v507 = vunpack.c.h.b16 %v45
  %v508 = vunpack.c.l.b16 %v46
  %v509 = vunpack.c.h.b16 %v46
  %v510 = vunpack.c.l.b16 %v47
  %v511 = vunpack.c.h.b16 %v47
  %v512 = vunpack.c.l.b16 %v48
  %v513 = vunpack.c.h.b16 %v48
  %v514 = vunpack.c.l.b16 %v49
  %v515 = vunpack.c.h.b16 %v49
  %v516 = vunpack.c.l.b16 %v50
  %v517 = vunpack.c.h.b16 %v50
  %v518 = vunpack.c.l.b16 %v51
  %v519 = vunpack.c.h.b16 %v51
  %v520 = vunpack.c.l.b16 %v52
  %v521 = vunpack.c.h.b16 %v52
  %v522 = vunpack.c.l.b16 %v53
  %v523 = vunpack.c.h.b16 %v53
  %v524 = vunpack.c.l.b16 %v54
  %v525 = vunpack.c.h.b16 %v54
  %v526 = vunpack.c.l.b16 %v55
  %v527 = vunpack.c.h.b16 %v55
  %v528 = vpack.c.b16 %v466, %v464
  %v529 = vpack.c.b16 %v467, %v465
  %v530 = vpack.c.b16 %v470, %v468
  %v531 = vpack.c.b16 %v471, %v469
  %v532 = vpack.c.b16 %v474, %v472
  %v533 = vpack.c.b16 %v475, %v473
  %v534 = vpack.c.b16 %v478, %v476
  %v535 = vpack.c.b16 %v479, %v477
  %v536 = vpack.c.b16 %v482, %v480
  %v537 = vpack.c.b16 %v483, %v481
  %v538 = vpack.c.b16 %v486, %v484
  %v539 = vpack.c.b16 %v487, %v485
  %v540 = vpack.c.b16 %v490, %v488
  %v541 = vpack.c.b16 %v491, %v489
  %v542 = vpack.c.b16 %v494, %v492
  %v543 = vpack.c.b16 %v495, %v493
  %v544 = vpack.c.b16 %v498, %v496
  %v545 = vpack.c.b16 %v499, %v497
  %v546 = vpack.c.b16 %v502, %v500
  %v547 = vpack.c.b16 %v503, %v501
  %v548 = vpack.c.b16 %v506, %v504
  %v549 = vpack.c.b16 %v507, %v505
  %v550 = vpack.c.b16 %v510, %v508
  %v551 = vpack.c.b16 %v511, %v509
  %v552 = vpack.c.b16 %v514, %v512
  %v553 = vpack.c.b16 %v515, %v513
  %v554 = vpack.c.b16 %v518, %v516
  %v555 = vpack.c.b16 %v519, %v517
  %v556 = vpack.c.b16 %v522, %v520
  %v557 = vpack.c.b16 %v523, %v521
  %v558 = vpack.c.b16 %v526, %v524
  %v559 = vpack.c.b16 %v527, %v525
  %592 = vmatprep.subr.bf16.mxu0 0
  %593 = vmatpush1.bf16.msra.mxu0 %v416
  %594 = vmatprep.subr.bf16.mxu0 0
  %595 = vmatpush1.bf16.msra.mxu0 %v415
  %596 = vmatprep.subr.bf16.mxu0 0
  %597 = vmatpush1.bf16.msra.mxu0 %v414
  %598 = vmatprep.subr.bf16.mxu0 0
  %599 = vmatpush1.bf16.msra.mxu0 %v413
  %600 = vmatprep.subr.bf16.mxu0 0
  %601 = vmatpush1.bf16.msra.mxu0 %v412
  %602 = vmatprep.subr.bf16.mxu0 0
  %603 = vmatpush1.bf16.msra.mxu0 %v411
  %604 = vmatprep.subr.bf16.mxu0 0
  %605 = vmatpush1.bf16.msra.mxu0 %v410
  %606 = vmatprep.subr.bf16.mxu0 0
  %607 = vmatpush1.bf16.msra.mxu0 %v409
  %608 = vmatprep.subr.bf16.mxu0 0
  %609 = vmatpush2.bf16.msra.mxu0 %v424
  %610 = vmatprep.subr.bf16.mxu0 0
  %611 = vmatpush2.bf16.msra.mxu0 %v423
  %612 = vmatprep.subr.bf16.mxu0 0
  %613 = vmatpush2.bf16.msra.mxu0 %v422
  %614 = vmatprep.subr.bf16.mxu0 0
  %615 = vmatpush2.bf16.msra.mxu0 %v421
  %616 = vmatprep.subr.bf16.mxu0 0
  %617 = vmatpush2.bf16.msra.mxu0 %v420
  %618 = vmatprep.subr.bf16.mxu0 0
  %619 = vmatpush2.bf16.msra.mxu0 %v419
  %620 = vmatprep.subr.bf16.mxu0 0
  %621 = vmatpush2.bf16.msra.mxu0 %v418
  %622 = vmatprep.subr.bf16.mxu0 0
  %623 = vmatpush2.bf16.msra.mxu0 %v417
  %624 = vmatprep.mubr.bf16.mxu0 %v529
  %625 = vmatmul.mubr.bf16.gmra.mxu0 %v528
  %v626 = vpop.f32.mrf.mxu0
  %v627 = vadd.f32 %v430, %v626
  %v628 = vpop.f32.mrf.mxu0
  %v629 = vpop.f32.mrf.mxu0
  %v630 = vadd.f32 %v430, %v629
  %v631 = vpop.f32.mrf.mxu0
  %632 = vmatprep.mubr.bf16.mxu0 %v531
  %633 = vmatmul.mubr.bf16.gmra.mxu0 %v530
  %v634 = vpop.f32.mrf.mxu0
  %v635 = vadd.f32 %v430, %v634
  %v636 = vpop.f32.mrf.mxu0
  %v637 = vpop.f32.mrf.mxu0
  %v638 = vadd.f32 %v430, %v637
  %v639 = vpop.f32.mrf.mxu0
  %640 = vmatprep.mubr.bf16.mxu0 %v533
  %641 = vmatmul.mubr.bf16.gmra.mxu0 %v532
  %v642 = vpop.f32.mrf.mxu0
  %v643 = vadd.f32 %v430, %v642
  %v644 = vpop.f32.mrf.mxu0
  %v645 = vpop.f32.mrf.mxu0
  %v646 = vadd.f32 %v430, %v645
  %v647 = vpop.f32.mrf.mxu0
  %648 = vmatprep.mubr.bf16.mxu0 %v535
  %649 = vmatmul.mubr.bf16.gmra.mxu0 %v534
  %v650 = vpop.f32.mrf.mxu0
  %v651 = vadd.f32 %v430, %v650
  %v652 = vpop.f32.mrf.mxu0
  %v653 = vpop.f32.mrf.mxu0
  %v654 = vadd.f32 %v430, %v653
  %v655 = vpop.f32.mrf.mxu0
  %656 = vmatprep.mubr.bf16.mxu0 %v537
  %657 = vmatmul.mubr.bf16.gmra.mxu0 %v536
  %v658 = vpop.f32.mrf.mxu0
  %v659 = vadd.f32 %v430, %v658
  %v660 = vpop.f32.mrf.mxu0
  %v661 = vpop.f32.mrf.mxu0
  %v662 = vadd.f32 %v430, %v661
  %v663 = vpop.f32.mrf.mxu0
  %664 = vmatprep.mubr.bf16.mxu0 %v539
  %665 = vmatmul.mubr.bf16.gmra.mxu0 %v538
  %v666 = vpop.f32.mrf.mxu0
  %v667 = vadd.f32 %v430, %v666
  %v668 = vpop.f32.mrf.mxu0
  %v669 = vpop.f32.mrf.mxu0
  %v670 = vadd.f32 %v430, %v669
  %v671 = vpop.f32.mrf.mxu0
  %672 = vmatprep.mubr.bf16.mxu0 %v541
  %673 = vmatmul.mubr.bf16.gmra.mxu0 %v540
  %v674 = vpop.f32.mrf.mxu0
  %v675 = vadd.f32 %v430, %v674
  %v676 = vpop.f32.mrf.mxu0
  %v677 = vpop.f32.mrf.mxu0
  %v678 = vadd.f32 %v430, %v677
  %v679 = vpop.f32.mrf.mxu0
  %680 = vmatprep.mubr.bf16.mxu0 %v543
  %681 = vmatmul.mubr.bf16.gmra.mxu0 %v542
  %v682 = vpop.f32.mrf.mxu0
  %v683 = vadd.f32 %v430, %v682
  %v684 = vpop.f32.mrf.mxu0
  %v685 = vpop.f32.mrf.mxu0
  %v686 = vadd.f32 %v430, %v685
  %v687 = vpop.f32.mrf.mxu0
  %688 = vmatprep.mubr.bf16.mxu0 %v545
  %689 = vmatmul.mubr.bf16.gmra.mxu0 %v544
  %v690 = vpop.f32.mrf.mxu0
  %v691 = vadd.f32 %v430, %v690
  %v692 = vpop.f32.mrf.mxu0
  %v693 = vpop.f32.mrf.mxu0
  %v694 = vadd.f32 %v430, %v693
  %v695 = vpop.f32.mrf.mxu0
  %696 = vmatprep.mubr.bf16.mxu0 %v547
  %697 = vmatmul.mubr.bf16.gmra.mxu0 %v546
  %v698 = vpop.f32.mrf.mxu0
  %v699 = vadd.f32 %v430, %v698
  %v700 = vpop.f32.mrf.mxu0
  %v701 = vpop.f32.mrf.mxu0
  %v702 = vadd.f32 %v430, %v701
  %v703 = vpop.f32.mrf.mxu0
  %704 = vmatprep.mubr.bf16.mxu0 %v549
  %705 = vmatmul.mubr.bf16.gmra.mxu0 %v548
  %v706 = vpop.f32.mrf.mxu0
  %v707 = vadd.f32 %v430, %v706
  %v708 = vpop.f32.mrf.mxu0
  %v709 = vpop.f32.mrf.mxu0
  %v710 = vadd.f32 %v430, %v709
  %v711 = vpop.f32.mrf.mxu0
  %712 = vmatprep.mubr.bf16.mxu0 %v551
  %713 = vmatmul.mubr.bf16.gmra.mxu0 %v550
  %v714 = vpop.f32.mrf.mxu0
  %v715 = vadd.f32 %v430, %v714
  %v716 = vpop.f32.mrf.mxu0
  %v717 = vpop.f32.mrf.mxu0
  %v718 = vadd.f32 %v430, %v717
  %v719 = vpop.f32.mrf.mxu0
  %720 = vmatprep.mubr.bf16.mxu0 %v553
  %721 = vmatmul.mubr.bf16.gmra.mxu0 %v552
  %v722 = vpop.f32.mrf.mxu0
  %v723 = vadd.f32 %v430, %v722
  %v724 = vpop.f32.mrf.mxu0
  %v725 = vpop.f32.mrf.mxu0
  %v726 = vadd.f32 %v430, %v725
  %v727 = vpop.f32.mrf.mxu0
  %728 = vmatprep.mubr.bf16.mxu0 %v555
  %729 = vmatmul.mubr.bf16.gmra.mxu0 %v554
  %v730 = vpop.f32.mrf.mxu0
  %v731 = vadd.f32 %v430, %v730
  %v732 = vpop.f32.mrf.mxu0
  %v733 = vpop.f32.mrf.mxu0
  %v734 = vadd.f32 %v430, %v733
  %v735 = vpop.f32.mrf.mxu0
  %736 = vmatprep.mubr.bf16.mxu0 %v557
  %737 = vmatmul.mubr.bf16.gmra.mxu0 %v556
  %v738 = vpop.f32.mrf.mxu0
  %v739 = vadd.f32 %v430, %v738
  %v740 = vpop.f32.mrf.mxu0
  %v741 = vpop.f32.mrf.mxu0
  %v742 = vadd.f32 %v430, %v741
  %v743 = vpop.f32.mrf.mxu0
  %744 = vmatprep.mubr.bf16.mxu0 %v559
  %745 = vmatmul.mubr.bf16.gmra.mxu0 %v558
  %v746 = vpop.f32.mrf.mxu0
  %v747 = vadd.f32 %v430, %v746
  %v748 = vpop.f32.mrf.mxu0
  %v749 = vpop.f32.mrf.mxu0
  %v750 = vadd.f32 %v430, %v749
  %v751 = vpop.f32.mrf.mxu0
  %752 = vdwg.mxu0
  %v753 = vmax.f32 %v627, 0.0
  %v754 = vmax.f32 %v630, 0.0
  %v755 = vmax.f32 %v635, 0.0
  %v756 = vmax.f32 %v638, 0.0
  %v757 = vmax.f32 %v643, 0.0
  %v758 = vmax.f32 %v646, 0.0
  %v759 = vmax.f32 %v651, 0.0
  %v760 = vmax.f32 %v654, 0.0
  %v761 = vmax.f32 %v659, 0.0
  %v762 = vmax.f32 %v662, 0.0
  %v763 = vmax.f32 %v667, 0.0
  %v764 = vmax.f32 %v670, 0.0
  %v765 = vmax.f32 %v675, 0.0
  %v766 = vmax.f32 %v678, 0.0
  %v767 = vmax.f32 %v683, 0.0
  %v768 = vmax.f32 %v686, 0.0
  %v769 = vmax.f32 %v691, 0.0
  %v770 = vmax.f32 %v694, 0.0
  %v771 = vmax.f32 %v699, 0.0
  %v772 = vmax.f32 %v702, 0.0
  %v773 = vmax.f32 %v707, 0.0
  %v774 = vmax.f32 %v710, 0.0
  %v775 = vmax.f32 %v715, 0.0
  %v776 = vmax.f32 %v718, 0.0
  %v777 = vmax.f32 %v723, 0.0
  %v778 = vmax.f32 %v726, 0.0
  %v779 = vmax.f32 %v731, 0.0
  %v780 = vmax.f32 %v734, 0.0
  %v781 = vmax.f32 %v739, 0.0
  %v782 = vmax.f32 %v742, 0.0
  %v783 = vmax.f32 %v747, 0.0
  %v784 = vmax.f32 %v750, 0.0
  %v785 = vpack.c.bf16 %v754, %v753
  %v786 = vpack.c.bf16 %v756, %v755
  %v787 = vpack.c.bf16 %v758, %v757
  %v788 = vpack.c.bf16 %v760, %v759
  %v789 = vpack.c.bf16 %v762, %v761
  %v790 = vpack.c.bf16 %v764, %v763
  %v791 = vpack.c.bf16 %v766, %v765
  %v792 = vpack.c.bf16 %v768, %v767
  %v793 = vpack.c.bf16 %v770, %v769
  %v794 = vpack.c.bf16 %v772, %v771
  %v795 = vpack.c.bf16 %v774, %v773
  %v796 = vpack.c.bf16 %v776, %v775
  %v797 = vpack.c.bf16 %v778, %v777
  %v798 = vpack.c.bf16 %v780, %v779
  %v799 = vpack.c.bf16 %v782, %v781
  %v800 = vpack.c.bf16 %v784, %v783
  %v801 = vld [vmem:[%s3] sm:$0xf]
  %v802 = vld [vmem:[%s3 + $0x4] sm:$0xf]
  %v803 = vld [vmem:[%s3 + $0x8] sm:$0xf]
  %v804 = vld [vmem:[%s3 + $0xc] sm:$0xf]
  %v805 = vld [vmem:[%s3 + $0x10] sm:$0xf]
  %v806 = vld [vmem:[%s3 + $0x14] sm:$0xf]
  %v807 = vld [vmem:[%s3 + $0x18] sm:$0xf]
  %v808 = vld [vmem:[%s3 + $0x1c] sm:$0xf]
  %v809 = vld [vmem:[%s3 + $0x20] sm:$0xf]
  %v810 = vld [vmem:[%s3 + $0x24] sm:$0xf]
  %v811 = vld [vmem:[%s3 + $0x28] sm:$0xf]
  %v812 = vld [vmem:[%s3 + $0x2c] sm:$0xf]
  %v813 = vld [vmem:[%s3 + $0x30] sm:$0xf]
  %v814 = vld [vmem:[%s3 + $0x34] sm:$0xf]
  %v815 = vld [vmem:[%s3 + $0x38] sm:$0xf]
  %v816 = vld [vmem:[%s3 + $0x3c] sm:$0xf]
  %v833 = vunpack.c.l.b16 %v801
  %v834 = vunpack.c.l.b16 %v802
  %v835 = vunpack.c.l.b16 %v803
  %v836 = vunpack.c.l.b16 %v804
  %v837 = vunpack.c.l.b16 %v805
  %v838 = vunpack.c.l.b16 %v806
  %v839 = vunpack.c.l.b16 %v807
  %v840 = vunpack.c.l.b16 %v808
  %v841 = vunpack.c.l.b16 %v809
  %v842 = vunpack.c.l.b16 %v810
  %v843 = vunpack.c.l.b16 %v811
  %v844 = vunpack.c.l.b16 %v812
  %v845 = vunpack.c.l.b16 %v813
  %v846 = vunpack.c.l.b16 %v814
  %v847 = vunpack.c.l.b16 %v815
  %v848 = vunpack.c.l.b16 %v816
  %v849 = vpack.c.b16 %v834, %v833
  %v850 = vpack.c.b16 %v836, %v835
  %v851 = vpack.c.b16 %v838, %v837
  %v852 = vpack.c.b16 %v840, %v839
  %v853 = vpack.c.b16 %v842, %v841
  %v854 = vpack.c.b16 %v844, %v843
  %v855 = vpack.c.b16 %v846, %v845
  %v856 = vpack.c.b16 %v848, %v847
  %865 = vmatprep.subr.bf16.mxu0 0
  %866 = vmatpush1.bf16.msra.mxu0 %v856
  %867 = vmatprep.subr.bf16.mxu0 0
  %868 = vmatpush1.bf16.msra.mxu0 %v855
  %869 = vmatprep.subr.bf16.mxu0 0
  %870 = vmatpush1.bf16.msra.mxu0 %v854
  %871 = vmatprep.subr.bf16.mxu0 0
  %872 = vmatpush1.bf16.msra.mxu0 %v853
  %873 = vmatprep.subr.bf16.mxu0 0
  %874 = vmatpush1.bf16.msra.mxu0 %v852
  %875 = vmatprep.subr.bf16.mxu0 0
  %876 = vmatpush1.bf16.msra.mxu0 %v851
  %877 = vmatprep.subr.bf16.mxu0 0
  %878 = vmatpush1.bf16.msra.mxu0 %v850
  %879 = vmatprep.subr.bf16.mxu0 0
  %880 = vmatpush1.bf16.msra.mxu0 %v849
  %881 = vmatprep.subr.bf16.mxu0 0
  %882 = vmatpush2.bf16.msra.mxu0 0
  %883 = vmatprep.subr.bf16.mxu0 0
  %884 = vmatpush2.bf16.msra.mxu0 0
  %885 = vmatprep.subr.bf16.mxu0 0
  %886 = vmatpush2.bf16.msra.mxu0 0
  %887 = vmatprep.subr.bf16.mxu0 0
  %888 = vmatpush2.bf16.msra.mxu0 0
  %889 = vmatprep.subr.bf16.mxu0 0
  %890 = vmatpush2.bf16.msra.mxu0 0
  %891 = vmatprep.subr.bf16.mxu0 0
  %892 = vmatpush2.bf16.msra.mxu0 0
  %893 = vmatprep.subr.bf16.mxu0 0
  %894 = vmatpush2.bf16.msra.mxu0 0
  %895 = vmatprep.subr.bf16.mxu0 0
  %896 = vmatpush2.bf16.msra.mxu0 0
  %897 = vmatprep.mubr.bf16.mxu0 0
  %898 = vmatmul.mubr.bf16.gmra.mxu0 %v785
  %v899 = vpop.f32.mrf.mxu0
  %v900 = vadd.f32 0.0, %v899
  %v901 = vpop.f32.mrf.mxu0
  %v902 = vpop.f32.mrf.mxu0
  %v903 = vadd.f32 0.0, %v902
  %v904 = vpop.f32.mrf.mxu0
  %905 = vmatprep.mubr.bf16.mxu0 0
  %906 = vmatmul.mubr.bf16.gmra.mxu0 %v786
  %v907 = vpop.f32.mrf.mxu0
  %v908 = vadd.f32 0.0, %v907
  %v909 = vpop.f32.mrf.mxu0
  %v910 = vpop.f32.mrf.mxu0
  %v911 = vadd.f32 0.0, %v910
  %v912 = vpop.f32.mrf.mxu0
  %913 = vmatprep.mubr.bf16.mxu0 0
  %914 = vmatmul.mubr.bf16.gmra.mxu0 %v787
  %v915 = vpop.f32.mrf.mxu0
  %v916 = vadd.f32 0.0, %v915
  %v917 = vpop.f32.mrf.mxu0
  %v918 = vpop.f32.mrf.mxu0
  %v919 = vadd.f32 0.0, %v918
  %v920 = vpop.f32.mrf.mxu0
  %921 = vmatprep.mubr.bf16.mxu0 0
  %922 = vmatmul.mubr.bf16.gmra.mxu0 %v788
  %v923 = vpop.f32.mrf.mxu0
  %v924 = vadd.f32 0.0, %v923
  %v925 = vpop.f32.mrf.mxu0
  %v926 = vpop.f32.mrf.mxu0
  %v927 = vadd.f32 0.0, %v926
  %v928 = vpop.f32.mrf.mxu0
  %929 = vmatprep.mubr.bf16.mxu0 0
  %930 = vmatmul.mubr.bf16.gmra.mxu0 %v789
  %v931 = vpop.f32.mrf.mxu0
  %v932 = vadd.f32 0.0, %v931
  %v933 = vpop.f32.mrf.mxu0
  %v934 = vpop.f32.mrf.mxu0
  %v935 = vadd.f32 0.0, %v934
  %v936 = vpop.f32.mrf.mxu0
  %937 = vmatprep.mubr.bf16.mxu0 0
  %938 = vmatmul.mubr.bf16.gmra.mxu0 %v790
  %v939 = vpop.f32.mrf.mxu0
  %v940 = vadd.f32 0.0, %v939
  %v941 = vpop.f32.mrf.mxu0
  %v942 = vpop.f32.mrf.mxu0
  %v943 = vadd.f32 0.0, %v942
  %v944 = vpop.f32.mrf.mxu0
  %945 = vmatprep.mubr.bf16.mxu0 0
  %946 = vmatmul.mubr.bf16.gmra.mxu0 %v791
  %v947 = vpop.f32.mrf.mxu0
  %v948 = vadd.f32 0.0, %v947
  %v949 = vpop.f32.mrf.mxu0
  %v950 = vpop.f32.mrf.mxu0
  %v951 = vadd.f32 0.0, %v950
  %v952 = vpop.f32.mrf.mxu0
  %953 = vmatprep.mubr.bf16.mxu0 0
  %954 = vmatmul.mubr.bf16.gmra.mxu0 %v792
  %v955 = vpop.f32.mrf.mxu0
  %v956 = vadd.f32 0.0, %v955
  %v957 = vpop.f32.mrf.mxu0
  %v958 = vpop.f32.mrf.mxu0
  %v959 = vadd.f32 0.0, %v958
  %v960 = vpop.f32.mrf.mxu0
  %961 = vmatprep.mubr.bf16.mxu0 0
  %962 = vmatmul.mubr.bf16.gmra.mxu0 %v793
  %v963 = vpop.f32.mrf.mxu0
  %v964 = vadd.f32 0.0, %v963
  %v965 = vpop.f32.mrf.mxu0
  %v966 = vpop.f32.mrf.mxu0
  %v967 = vadd.f32 0.0, %v966
  %v968 = vpop.f32.mrf.mxu0
  %969 = vmatprep.mubr.bf16.mxu0 0
  %970 = vmatmul.mubr.bf16.gmra.mxu0 %v794
  %v971 = vpop.f32.mrf.mxu0
  %v972 = vadd.f32 0.0, %v971
  %v973 = vpop.f32.mrf.mxu0
  %v974 = vpop.f32.mrf.mxu0
  %v975 = vadd.f32 0.0, %v974
  %v976 = vpop.f32.mrf.mxu0
  %977 = vmatprep.mubr.bf16.mxu0 0
  %978 = vmatmul.mubr.bf16.gmra.mxu0 %v795
  %v979 = vpop.f32.mrf.mxu0
  %v980 = vadd.f32 0.0, %v979
  %v981 = vpop.f32.mrf.mxu0
  %v982 = vpop.f32.mrf.mxu0
  %v983 = vadd.f32 0.0, %v982
  %v984 = vpop.f32.mrf.mxu0
  %985 = vmatprep.mubr.bf16.mxu0 0
  %986 = vmatmul.mubr.bf16.gmra.mxu0 %v796
  %v987 = vpop.f32.mrf.mxu0
  %v988 = vadd.f32 0.0, %v987
  %v989 = vpop.f32.mrf.mxu0
  %v990 = vpop.f32.mrf.mxu0
  %v991 = vadd.f32 0.0, %v990
  %v992 = vpop.f32.mrf.mxu0
  %993 = vmatprep.mubr.bf16.mxu0 0
  %994 = vmatmul.mubr.bf16.gmra.mxu0 %v797
  %v995 = vpop.f32.mrf.mxu0
  %v996 = vadd.f32 0.0, %v995
  %v997 = vpop.f32.mrf.mxu0
  %v998 = vpop.f32.mrf.mxu0
  %v999 = vadd.f32 0.0, %v998
  %v1000 = vpop.f32.mrf.mxu0
  %1001 = vmatprep.mubr.bf16.mxu0 0
  %1002 = vmatmul.mubr.bf16.gmra.mxu0 %v798
  %v1003 = vpop.f32.mrf.mxu0
  %v1004 = vadd.f32 0.0, %v1003
  %v1005 = vpop.f32.mrf.mxu0
  %v1006 = vpop.f32.mrf.mxu0
  %v1007 = vadd.f32 0.0, %v1006
  %v1008 = vpop.f32.mrf.mxu0
  %1009 = vmatprep.mubr.bf16.mxu0 0
  %1010 = vmatmul.mubr.bf16.gmra.mxu0 %v799
  %v1011 = vpop.f32.mrf.mxu0
  %v1012 = vadd.f32 0.0, %v1011
  %v1013 = vpop.f32.mrf.mxu0
  %v1014 = vpop.f32.mrf.mxu0
  %v1015 = vadd.f32 0.0, %v1014
  %v1016 = vpop.f32.mrf.mxu0
  %1017 = vmatprep.mubr.bf16.mxu0 0
  %1018 = vmatmul.mubr.bf16.gmra.mxu0 %v800
  %v1019 = vpop.f32.mrf.mxu0
  %v1020 = vadd.f32 0.0, %v1019
  %v1021 = vpop.f32.mrf.mxu0
  %v1022 = vpop.f32.mrf.mxu0
  %v1023 = vadd.f32 0.0, %v1022
  %v1024 = vpop.f32.mrf.mxu0
  %1025 = vdwg.mxu0
  %v1026 = vpack.c.bf16 %v903, %v900
  %v1027 = vpack.c.bf16 %v911, %v908
  %v1028 = vpack.c.bf16 %v919, %v916
  %v1029 = vpack.c.bf16 %v927, %v924
  %v1030 = vpack.c.bf16 %v935, %v932
  %v1031 = vpack.c.bf16 %v943, %v940
  %v1032 = vpack.c.bf16 %v951, %v948
  %v1033 = vpack.c.bf16 %v959, %v956
  %v1034 = vpack.c.bf16 %v967, %v964
  %v1035 = vpack.c.bf16 %v975, %v972
  %v1036 = vpack.c.bf16 %v983, %v980
  %v1037 = vpack.c.bf16 %v991, %v988
  %v1038 = vpack.c.bf16 %v999, %v996
  %v1039 = vpack.c.bf16 %v1007, %v1004
  %v1040 = vpack.c.bf16 %v1015, %v1012
  %v1041 = vpack.c.bf16 %v1023, %v1020
  %v1042 = vld [vmem:[%s5] sm:$0x1]
  %v1044 = vlaneseq
  %v1045 = vshrl.u32 %v1044, 7
  %v1046 = vsub.s32 0, %v1045
  %v1047 = vrot.slane %v1042, %v1046
  %1049 = vmatprep.subr.bf16.mxu0 0
  %1050 = vmatpush1.bf16.msra.mxu0 %v1033
  %1051 = vmatprep.subr.bf16.mxu0 0
  %1052 = vmatpush1.bf16.msra.mxu0 %v1032
  %1053 = vmatprep.subr.bf16.mxu0 0
  %1054 = vmatpush1.bf16.msra.mxu0 %v1031
  %1055 = vmatprep.subr.bf16.mxu0 0
  %1056 = vmatpush1.bf16.msra.mxu0 %v1030
  %1057 = vmatprep.subr.bf16.mxu0 0
  %1058 = vmatpush1.bf16.msra.mxu0 %v1029
  %1059 = vmatprep.subr.bf16.mxu0 0
  %1060 = vmatpush1.bf16.msra.mxu0 %v1028
  %1061 = vmatprep.subr.bf16.mxu0 0
  %1062 = vmatpush1.bf16.msra.mxu0 %v1027
  %1063 = vmatprep.subr.bf16.mxu0 0
  %1064 = vmatpush1.bf16.msra.mxu0 %v1026
  %1065 = vmatprep.subr.bf16.mxu0 0
  %1066 = vmatpush2.bf16.msra.mxu0 %v1041
  %1067 = vmatprep.subr.bf16.mxu0 0
  %1068 = vmatpush2.bf16.msra.mxu0 %v1040
  %1069 = vmatprep.subr.bf16.mxu0 0
  %1070 = vmatpush2.bf16.msra.mxu0 %v1039
  %1071 = vmatprep.subr.bf16.mxu0 0
  %1072 = vmatpush2.bf16.msra.mxu0 %v1038
  %1073 = vmatprep.subr.bf16.mxu0 0
  %1074 = vmatpush2.bf16.msra.mxu0 %v1037
  %1075 = vmatprep.subr.bf16.mxu0 0
  %1076 = vmatpush2.bf16.msra.mxu0 %v1036
  %1077 = vmatprep.subr.bf16.mxu0 0
  %1078 = vmatpush2.bf16.msra.mxu0 %v1035
  %1079 = vmatprep.subr.bf16.mxu0 0
  %1080 = vmatpush2.bf16.msra.mxu0 %v1034
  %1081 = vmatprep.mubr.bf16.mxu0 %v529
  %1082 = vmatmul.mubr.bf16.gmra.mxu0 %v528
  %v1083 = vpop.f32.mrf.mxu0
  %v1084 = vadd.f32 %v1047, %v1083
  %v1085 = vpop.f32.mrf.mxu0
  %v1086 = vpop.f32.mrf.mxu0
  %v1087 = vadd.f32 %v1047, %v1086
  %v1088 = vpop.f32.mrf.mxu0
  %1089 = vmatprep.mubr.bf16.mxu0 %v531
  %1090 = vmatmul.mubr.bf16.gmra.mxu0 %v530
  %v1091 = vpop.f32.mrf.mxu0
  %v1092 = vadd.f32 %v1047, %v1091
  %v1093 = vpop.f32.mrf.mxu0
  %v1094 = vpop.f32.mrf.mxu0
  %v1095 = vadd.f32 %v1047, %v1094
  %v1096 = vpop.f32.mrf.mxu0
  %1097 = vmatprep.mubr.bf16.mxu0 %v533
  %1098 = vmatmul.mubr.bf16.gmra.mxu0 %v532
  %v1099 = vpop.f32.mrf.mxu0
  %v1100 = vadd.f32 %v1047, %v1099
  %v1101 = vpop.f32.mrf.mxu0
  %v1102 = vpop.f32.mrf.mxu0
  %v1103 = vadd.f32 %v1047, %v1102
  %v1104 = vpop.f32.mrf.mxu0
  %1105 = vmatprep.mubr.bf16.mxu0 %v535
  %1106 = vmatmul.mubr.bf16.gmra.mxu0 %v534
  %v1107 = vpop.f32.mrf.mxu0
  %v1108 = vadd.f32 %v1047, %v1107
  %v1109 = vpop.f32.mrf.mxu0
  %v1110 = vpop.f32.mrf.mxu0
  %v1111 = vadd.f32 %v1047, %v1110
  %v1112 = vpop.f32.mrf.mxu0
  %1113 = vmatprep.mubr.bf16.mxu0 %v537
  %1114 = vmatmul.mubr.bf16.gmra.mxu0 %v536
  %v1115 = vpop.f32.mrf.mxu0
  %v1116 = vadd.f32 %v1047, %v1115
  %v1117 = vpop.f32.mrf.mxu0
  %v1118 = vpop.f32.mrf.mxu0
  %v1119 = vadd.f32 %v1047, %v1118
  %v1120 = vpop.f32.mrf.mxu0
  %1121 = vmatprep.mubr.bf16.mxu0 %v539
  %1122 = vmatmul.mubr.bf16.gmra.mxu0 %v538
  %v1123 = vpop.f32.mrf.mxu0
  %v1124 = vadd.f32 %v1047, %v1123
  %v1125 = vpop.f32.mrf.mxu0
  %v1126 = vpop.f32.mrf.mxu0
  %v1127 = vadd.f32 %v1047, %v1126
  %v1128 = vpop.f32.mrf.mxu0
  %1129 = vmatprep.mubr.bf16.mxu0 %v541
  %1130 = vmatmul.mubr.bf16.gmra.mxu0 %v540
  %v1131 = vpop.f32.mrf.mxu0
  %v1132 = vadd.f32 %v1047, %v1131
  %v1133 = vpop.f32.mrf.mxu0
  %v1134 = vpop.f32.mrf.mxu0
  %v1135 = vadd.f32 %v1047, %v1134
  %v1136 = vpop.f32.mrf.mxu0
  %1137 = vmatprep.mubr.bf16.mxu0 %v543
  %1138 = vmatmul.mubr.bf16.gmra.mxu0 %v542
  %v1139 = vpop.f32.mrf.mxu0
  %v1140 = vadd.f32 %v1047, %v1139
  %v1141 = vpop.f32.mrf.mxu0
  %v1142 = vpop.f32.mrf.mxu0
  %v1143 = vadd.f32 %v1047, %v1142
  %v1144 = vpop.f32.mrf.mxu0
  %1145 = vmatprep.mubr.bf16.mxu0 %v545
  %1146 = vmatmul.mubr.bf16.gmra.mxu0 %v544
  %v1147 = vpop.f32.mrf.mxu0
  %v1148 = vadd.f32 %v1047, %v1147
  %v1149 = vpop.f32.mrf.mxu0
  %v1150 = vpop.f32.mrf.mxu0
  %v1151 = vadd.f32 %v1047, %v1150
  %v1152 = vpop.f32.mrf.mxu0
  %1153 = vmatprep.mubr.bf16.mxu0 %v547
  %1154 = vmatmul.mubr.bf16.gmra.mxu0 %v546
  %v1155 = vpop.f32.mrf.mxu0
  %v1156 = vadd.f32 %v1047, %v1155
  %v1157 = vpop.f32.mrf.mxu0
  %v1158 = vpop.f32.mrf.mxu0
  %v1159 = vadd.f32 %v1047, %v1158
  %v1160 = vpop.f32.mrf.mxu0
  %1161 = vmatprep.mubr.bf16.mxu0 %v549
  %1162 = vmatmul.mubr.bf16.gmra.mxu0 %v548
  %v1163 = vpop.f32.mrf.mxu0
  %v1164 = vadd.f32 %v1047, %v1163
  %v1165 = vpop.f32.mrf.mxu0
  %v1166 = vpop.f32.mrf.mxu0
  %v1167 = vadd.f32 %v1047, %v1166
  %v1168 = vpop.f32.mrf.mxu0
  %1169 = vmatprep.mubr.bf16.mxu0 %v551
  %1170 = vmatmul.mubr.bf16.gmra.mxu0 %v550
  %v1171 = vpop.f32.mrf.mxu0
  %v1172 = vadd.f32 %v1047, %v1171
  %v1173 = vpop.f32.mrf.mxu0
  %v1174 = vpop.f32.mrf.mxu0
  %v1175 = vadd.f32 %v1047, %v1174
  %v1176 = vpop.f32.mrf.mxu0
  %1177 = vmatprep.mubr.bf16.mxu0 %v553
  %1178 = vmatmul.mubr.bf16.gmra.mxu0 %v552
  %v1179 = vpop.f32.mrf.mxu0
  %v1180 = vadd.f32 %v1047, %v1179
  %v1181 = vpop.f32.mrf.mxu0
  %v1182 = vpop.f32.mrf.mxu0
  %v1183 = vadd.f32 %v1047, %v1182
  %v1184 = vpop.f32.mrf.mxu0
  %1185 = vmatprep.mubr.bf16.mxu0 %v555
  %1186 = vmatmul.mubr.bf16.gmra.mxu0 %v554
  %v1187 = vpop.f32.mrf.mxu0
  %v1188 = vadd.f32 %v1047, %v1187
  %v1189 = vpop.f32.mrf.mxu0
  %v1190 = vpop.f32.mrf.mxu0
  %v1191 = vadd.f32 %v1047, %v1190
  %v1192 = vpop.f32.mrf.mxu0
  %1193 = vmatprep.mubr.bf16.mxu0 %v557
  %1194 = vmatmul.mubr.bf16.gmra.mxu0 %v556
  %v1195 = vpop.f32.mrf.mxu0
  %v1196 = vadd.f32 %v1047, %v1195
  %v1197 = vpop.f32.mrf.mxu0
  %v1198 = vpop.f32.mrf.mxu0
  %v1199 = vadd.f32 %v1047, %v1198
  %v1200 = vpop.f32.mrf.mxu0
  %1201 = vmatprep.mubr.bf16.mxu0 %v559
  %1202 = vmatmul.mubr.bf16.gmra.mxu0 %v558
  %v1203 = vpop.f32.mrf.mxu0
  %v1204 = vadd.f32 %v1047, %v1203
  %v1205 = vpop.f32.mrf.mxu0
  %v1206 = vpop.f32.mrf.mxu0
  %v1207 = vadd.f32 %v1047, %v1206
  %v1208 = vpop.f32.mrf.mxu0
  %1209 = vdwg.mxu0
  %v1210 = vlaneseq
  %v1211 = vand.u32 %v1210, 127
  %vm1212 = vcmp.lt.s32.totalorder %v1211, 7
  %v1213 = vsel %vm1212, %v1084, -inf
  %v1214 = vsel %vm1212, %v1087, -inf
  %v1215 = vsel %vm1212, %v1092, -inf
  %v1216 = vsel %vm1212, %v1095, -inf
  %v1217 = vsel %vm1212, %v1100, -inf
  %v1218 = vsel %vm1212, %v1103, -inf
  %v1219 = vsel %vm1212, %v1108, -inf
  %v1220 = vsel %vm1212, %v1111, -inf
  %v1221 = vsel %vm1212, %v1116, -inf
  %v1222 = vsel %vm1212, %v1119, -inf
  %v1223 = vsel %vm1212, %v1124, -inf
  %v1224 = vsel %vm1212, %v1127, -inf
  %v1225 = vsel %vm1212, %v1132, -inf
  %v1226 = vsel %vm1212, %v1135, -inf
  %v1227 = vsel %vm1212, %v1140, -inf
  %v1228 = vsel %vm1212, %v1143, -inf
  %v1229 = vsel %vm1212, %v1148, -inf
  %v1230 = vsel %vm1212, %v1151, -inf
  %v1231 = vsel %vm1212, %v1156, -inf
  %v1232 = vsel %vm1212, %v1159, -inf
  %v1233 = vsel %vm1212, %v1164, -inf
  %v1234 = vsel %vm1212, %v1167, -inf
  %v1235 = vsel %vm1212, %v1172, -inf
  %v1236 = vsel %vm1212, %v1175, -inf
  %v1237 = vsel %vm1212, %v1180, -inf
  %v1238 = vsel %vm1212, %v1183, -inf
  %v1239 = vsel %vm1212, %v1188, -inf
  %v1240 = vsel %vm1212, %v1191, -inf
  %v1241 = vsel %vm1212, %v1196, -inf
  %v1242 = vsel %vm1212, %v1199, -inf
  %v1243 = vsel %vm1212, %v1204, -inf
  %v1244 = vsel %vm1212, %v1207, -inf
  %1245 = vmax.xlane.f32.xlu0 %v1213
  %v1246 = vpop.xlane.xlu0 %1245
  %1247 = vmax.xlane.f32.xlu0 %v1214
  %v1248 = vpop.xlane.xlu0 %1247
  %1249 = vmax.xlane.f32.xlu0 %v1215
  %v1250 = vpop.xlane.xlu0 %1249
  %1251 = vmax.xlane.f32.xlu0 %v1216
  %v1252 = vpop.xlane.xlu0 %1251
  %1253 = vmax.xlane.f32.xlu0 %v1217
  %v1254 = vpop.xlane.xlu0 %1253
  %1255 = vmax.xlane.f32.xlu0 %v1218
  %v1256 = vpop.xlane.xlu0 %1255
  %1257 = vmax.xlane.f32.xlu0 %v1219
  %v1258 = vpop.xlane.xlu0 %1257
  %1259 = vmax.xlane.f32.xlu0 %v1220
  %v1260 = vpop.xlane.xlu0 %1259
  %1261 = vmax.xlane.f32.xlu0 %v1221
  %v1262 = vpop.xlane.xlu0 %1261
  %1263 = vmax.xlane.f32.xlu0 %v1222
  %v1264 = vpop.xlane.xlu0 %1263
  %1265 = vmax.xlane.f32.xlu0 %v1223
  %v1266 = vpop.xlane.xlu0 %1265
  %1267 = vmax.xlane.f32.xlu0 %v1224
  %v1268 = vpop.xlane.xlu0 %1267
  %1269 = vmax.xlane.f32.xlu0 %v1225
  %v1270 = vpop.xlane.xlu0 %1269
  %1271 = vmax.xlane.f32.xlu0 %v1226
  %v1272 = vpop.xlane.xlu0 %1271
  %1273 = vmax.xlane.f32.xlu0 %v1227
  %v1274 = vpop.xlane.xlu0 %1273
  %1275 = vmax.xlane.f32.xlu0 %v1228
  %v1276 = vpop.xlane.xlu0 %1275
  %1277 = vmax.xlane.f32.xlu0 %v1229
  %v1278 = vpop.xlane.xlu0 %1277
  %1279 = vmax.xlane.f32.xlu0 %v1230
  %v1280 = vpop.xlane.xlu0 %1279
  %1281 = vmax.xlane.f32.xlu0 %v1231
  %v1282 = vpop.xlane.xlu0 %1281
  %1283 = vmax.xlane.f32.xlu0 %v1232
  %v1284 = vpop.xlane.xlu0 %1283
  %1285 = vmax.xlane.f32.xlu0 %v1233
  %v1286 = vpop.xlane.xlu0 %1285
  %1287 = vmax.xlane.f32.xlu0 %v1234
  %v1288 = vpop.xlane.xlu0 %1287
  %1289 = vmax.xlane.f32.xlu0 %v1235
  %v1290 = vpop.xlane.xlu0 %1289
  %1291 = vmax.xlane.f32.xlu0 %v1236
  %v1292 = vpop.xlane.xlu0 %1291
  %1293 = vmax.xlane.f32.xlu0 %v1237
  %v1294 = vpop.xlane.xlu0 %1293
  %1295 = vmax.xlane.f32.xlu0 %v1238
  %v1296 = vpop.xlane.xlu0 %1295
  %1297 = vmax.xlane.f32.xlu0 %v1239
  %v1298 = vpop.xlane.xlu0 %1297
  %1299 = vmax.xlane.f32.xlu0 %v1240
  %v1300 = vpop.xlane.xlu0 %1299
  %1301 = vmax.xlane.f32.xlu0 %v1241
  %v1302 = vpop.xlane.xlu0 %1301
  %1303 = vmax.xlane.f32.xlu0 %v1242
  %v1304 = vpop.xlane.xlu0 %1303
  %1305 = vmax.xlane.f32.xlu0 %v1243
  %v1306 = vpop.xlane.xlu0 %1305
  %1307 = vmax.xlane.f32.xlu0 %v1244
  %v1308 = vpop.xlane.xlu0 %1307
  %v1309 = vsub.f32 %v1213, %v1246
  %v1310 = vsub.f32 %v1214, %v1248
  %v1311 = vsub.f32 %v1215, %v1250
  %v1312 = vsub.f32 %v1216, %v1252
  %v1313 = vsub.f32 %v1217, %v1254
  %v1314 = vsub.f32 %v1218, %v1256
  %v1315 = vsub.f32 %v1219, %v1258
  %v1316 = vsub.f32 %v1220, %v1260
  %v1317 = vsub.f32 %v1221, %v1262
  %v1318 = vsub.f32 %v1222, %v1264
  %v1319 = vsub.f32 %v1223, %v1266
  %v1320 = vsub.f32 %v1224, %v1268
  %v1321 = vsub.f32 %v1225, %v1270
  %v1322 = vsub.f32 %v1226, %v1272
  %v1323 = vsub.f32 %v1227, %v1274
  %v1324 = vsub.f32 %v1228, %v1276
  %v1325 = vsub.f32 %v1229, %v1278
  %v1326 = vsub.f32 %v1230, %v1280
  %v1327 = vsub.f32 %v1231, %v1282
  %v1328 = vsub.f32 %v1232, %v1284
  %v1329 = vsub.f32 %v1233, %v1286
  %v1330 = vsub.f32 %v1234, %v1288
  %v1331 = vsub.f32 %v1235, %v1290
  %v1332 = vsub.f32 %v1236, %v1292
  %v1333 = vsub.f32 %v1237, %v1294
  %v1334 = vsub.f32 %v1238, %v1296
  %v1335 = vsub.f32 %v1239, %v1298
  %v1336 = vsub.f32 %v1240, %v1300
  %v1337 = vsub.f32 %v1241, %v1302
  %v1338 = vsub.f32 %v1242, %v1304
  %v1339 = vsub.f32 %v1243, %v1306
  %v1340 = vsub.f32 %v1244, %v1308
  %v1341 = vmul.f32 %v1309, 1.442695
  %v1342 = vpow.pop %v1341
  %v1343 = vmul.f32 %v1310, 1.442695
  %v1344 = vpow.pop %v1343
  %v1345 = vmul.f32 %v1311, 1.442695
  %v1346 = vpow.pop %v1345
  %v1347 = vmul.f32 %v1312, 1.442695
  %v1348 = vpow.pop %v1347
  %v1349 = vmul.f32 %v1313, 1.442695
  %v1350 = vpow.pop %v1349
  %v1351 = vmul.f32 %v1314, 1.442695
  %v1352 = vpow.pop %v1351
  %v1353 = vmul.f32 %v1315, 1.442695
  %v1354 = vpow.pop %v1353
  %v1355 = vmul.f32 %v1316, 1.442695
  %v1356 = vpow.pop %v1355
  %v1357 = vmul.f32 %v1317, 1.442695
  %v1358 = vpow.pop %v1357
  %v1359 = vmul.f32 %v1318, 1.442695
  %v1360 = vpow.pop %v1359
  %v1361 = vmul.f32 %v1319, 1.442695
  %v1362 = vpow.pop %v1361
  %v1363 = vmul.f32 %v1320, 1.442695
  %v1364 = vpow.pop %v1363
  %v1365 = vmul.f32 %v1321, 1.442695
  %v1366 = vpow.pop %v1365
  %v1367 = vmul.f32 %v1322, 1.442695
  %v1368 = vpow.pop %v1367
  %v1369 = vmul.f32 %v1323, 1.442695
  %v1370 = vpow.pop %v1369
  %v1371 = vmul.f32 %v1324, 1.442695
  %v1372 = vpow.pop %v1371
  %v1373 = vmul.f32 %v1325, 1.442695
  %v1374 = vpow.pop %v1373
  %v1375 = vmul.f32 %v1326, 1.442695
  %v1376 = vpow.pop %v1375
  %v1377 = vmul.f32 %v1327, 1.442695
  %v1378 = vpow.pop %v1377
  %v1379 = vmul.f32 %v1328, 1.442695
  %v1380 = vpow.pop %v1379
  %v1381 = vmul.f32 %v1329, 1.442695
  %v1382 = vpow.pop %v1381
  %v1383 = vmul.f32 %v1330, 1.442695
  %v1384 = vpow.pop %v1383
  %v1385 = vmul.f32 %v1331, 1.442695
  %v1386 = vpow.pop %v1385
  %v1387 = vmul.f32 %v1332, 1.442695
  %v1388 = vpow.pop %v1387
  %v1389 = vmul.f32 %v1333, 1.442695
  %v1390 = vpow.pop %v1389
  %v1391 = vmul.f32 %v1334, 1.442695
  %v1392 = vpow.pop %v1391
  %v1393 = vmul.f32 %v1335, 1.442695
  %v1394 = vpow.pop %v1393
  %v1395 = vmul.f32 %v1336, 1.442695
  %v1396 = vpow.pop %v1395
  %v1397 = vmul.f32 %v1337, 1.442695
  %v1398 = vpow.pop %v1397
  %v1399 = vmul.f32 %v1338, 1.442695
  %v1400 = vpow.pop %v1399
  %v1401 = vmul.f32 %v1339, 1.442695
  %v1402 = vpow.pop %v1401
  %v1403 = vmul.f32 %v1340, 1.442695
  %v1404 = vpow.pop %v1403
  %1405 = vadd.xlane.f32.xlu0 %v1342
  %v1406 = vpop.xlane.xlu0 %1405
  %1407 = vadd.xlane.f32.xlu0 %v1344
  %v1408 = vpop.xlane.xlu0 %1407
  %1409 = vadd.xlane.f32.xlu0 %v1346
  %v1410 = vpop.xlane.xlu0 %1409
  %1411 = vadd.xlane.f32.xlu0 %v1348
  %v1412 = vpop.xlane.xlu0 %1411
  %1413 = vadd.xlane.f32.xlu0 %v1350
  %v1414 = vpop.xlane.xlu0 %1413
  %1415 = vadd.xlane.f32.xlu0 %v1352
  %v1416 = vpop.xlane.xlu0 %1415
  %1417 = vadd.xlane.f32.xlu0 %v1354
  %v1418 = vpop.xlane.xlu0 %1417
  %1419 = vadd.xlane.f32.xlu0 %v1356
  %v1420 = vpop.xlane.xlu0 %1419
  %1421 = vadd.xlane.f32.xlu0 %v1358
  %v1422 = vpop.xlane.xlu0 %1421
  %1423 = vadd.xlane.f32.xlu0 %v1360
  %v1424 = vpop.xlane.xlu0 %1423
  %1425 = vadd.xlane.f32.xlu0 %v1362
  %v1426 = vpop.xlane.xlu0 %1425
  %1427 = vadd.xlane.f32.xlu0 %v1364
  %v1428 = vpop.xlane.xlu0 %1427
  %1429 = vadd.xlane.f32.xlu0 %v1366
  %v1430 = vpop.xlane.xlu0 %1429
  %1431 = vadd.xlane.f32.xlu0 %v1368
  %v1432 = vpop.xlane.xlu0 %1431
  %1433 = vadd.xlane.f32.xlu0 %v1370
  %v1434 = vpop.xlane.xlu0 %1433
  %1435 = vadd.xlane.f32.xlu0 %v1372
  %v1436 = vpop.xlane.xlu0 %1435
  %1437 = vadd.xlane.f32.xlu0 %v1374
  %v1438 = vpop.xlane.xlu0 %1437
  %1439 = vadd.xlane.f32.xlu0 %v1376
  %v1440 = vpop.xlane.xlu0 %1439
  %1441 = vadd.xlane.f32.xlu0 %v1378
  %v1442 = vpop.xlane.xlu0 %1441
  %1443 = vadd.xlane.f32.xlu0 %v1380
  %v1444 = vpop.xlane.xlu0 %1443
  %1445 = vadd.xlane.f32.xlu0 %v1382
  %v1446 = vpop.xlane.xlu0 %1445
  %1447 = vadd.xlane.f32.xlu0 %v1384
  %v1448 = vpop.xlane.xlu0 %1447
  %1449 = vadd.xlane.f32.xlu0 %v1386
  %v1450 = vpop.xlane.xlu0 %1449
  %1451 = vadd.xlane.f32.xlu0 %v1388
  %v1452 = vpop.xlane.xlu0 %1451
  %1453 = vadd.xlane.f32.xlu0 %v1390
  %v1454 = vpop.xlane.xlu0 %1453
  %1455 = vadd.xlane.f32.xlu0 %v1392
  %v1456 = vpop.xlane.xlu0 %1455
  %1457 = vadd.xlane.f32.xlu0 %v1394
  %v1458 = vpop.xlane.xlu0 %1457
  %1459 = vadd.xlane.f32.xlu0 %v1396
  %v1460 = vpop.xlane.xlu0 %1459
  %1461 = vadd.xlane.f32.xlu0 %v1398
  %v1462 = vpop.xlane.xlu0 %1461
  %1463 = vadd.xlane.f32.xlu0 %v1400
  %v1464 = vpop.xlane.xlu0 %1463
  %1465 = vadd.xlane.f32.xlu0 %v1402
  %v1466 = vpop.xlane.xlu0 %1465
  %1467 = vadd.xlane.f32.xlu0 %v1404
  %v1468 = vpop.xlane.xlu0 %1467
  %v1469 = vlog2.pop %v1406
  %v1470 = vmul.f32 %v1469, 0.6931472
  %v1471 = vlog2.pop %v1408
  %v1472 = vmul.f32 %v1471, 0.6931472
  %v1473 = vlog2.pop %v1410
  %v1474 = vmul.f32 %v1473, 0.6931472
  %v1475 = vlog2.pop %v1412
  %v1476 = vmul.f32 %v1475, 0.6931472
  %v1477 = vlog2.pop %v1414
  %v1478 = vmul.f32 %v1477, 0.6931472
  %v1479 = vlog2.pop %v1416
  %v1480 = vmul.f32 %v1479, 0.6931472
  %v1481 = vlog2.pop %v1418
  %v1482 = vmul.f32 %v1481, 0.6931472
  %v1483 = vlog2.pop %v1420
  %v1484 = vmul.f32 %v1483, 0.6931472
  %v1485 = vlog2.pop %v1422
  %v1486 = vmul.f32 %v1485, 0.6931472
  %v1487 = vlog2.pop %v1424
  %v1488 = vmul.f32 %v1487, 0.6931472
  %v1489 = vlog2.pop %v1426
  %v1490 = vmul.f32 %v1489, 0.6931472
  %v1491 = vlog2.pop %v1428
  %v1492 = vmul.f32 %v1491, 0.6931472
  %v1493 = vlog2.pop %v1430
  %v1494 = vmul.f32 %v1493, 0.6931472
  %v1495 = vlog2.pop %v1432
  %v1496 = vmul.f32 %v1495, 0.6931472
  %v1497 = vlog2.pop %v1434
  %v1498 = vmul.f32 %v1497, 0.6931472
  %v1499 = vlog2.pop %v1436
  %v1500 = vmul.f32 %v1499, 0.6931472
  %v1501 = vlog2.pop %v1438
  %v1502 = vmul.f32 %v1501, 0.6931472
  %v1503 = vlog2.pop %v1440
  %v1504 = vmul.f32 %v1503, 0.6931472
  %v1505 = vlog2.pop %v1442
  %v1506 = vmul.f32 %v1505, 0.6931472
  %v1507 = vlog2.pop %v1444
  %v1508 = vmul.f32 %v1507, 0.6931472
  %v1509 = vlog2.pop %v1446
  %v1510 = vmul.f32 %v1509, 0.6931472
  %v1511 = vlog2.pop %v1448
  %v1512 = vmul.f32 %v1511, 0.6931472
  %v1513 = vlog2.pop %v1450
  %v1514 = vmul.f32 %v1513, 0.6931472
  %v1515 = vlog2.pop %v1452
  %v1516 = vmul.f32 %v1515, 0.6931472
  %v1517 = vlog2.pop %v1454
  %v1518 = vmul.f32 %v1517, 0.6931472
  %v1519 = vlog2.pop %v1456
  %v1520 = vmul.f32 %v1519, 0.6931472
  %v1521 = vlog2.pop %v1458
  %v1522 = vmul.f32 %v1521, 0.6931472
  %v1523 = vlog2.pop %v1460
  %v1524 = vmul.f32 %v1523, 0.6931472
  %v1525 = vlog2.pop %v1462
  %v1526 = vmul.f32 %v1525, 0.6931472
  %v1527 = vlog2.pop %v1464
  %v1528 = vmul.f32 %v1527, 0.6931472
  %v1529 = vlog2.pop %v1466
  %v1530 = vmul.f32 %v1529, 0.6931472
  %v1531 = vlog2.pop %v1468
  %v1532 = vmul.f32 %v1531, 0.6931472
  %v1533 = vadd.f32 %v1246, %v1470
  %v1534 = vadd.f32 %v1248, %v1472
  %v1535 = vadd.f32 %v1250, %v1474
  %v1536 = vadd.f32 %v1252, %v1476
  %v1537 = vadd.f32 %v1254, %v1478
  %v1538 = vadd.f32 %v1256, %v1480
  %v1539 = vadd.f32 %v1258, %v1482
  %v1540 = vadd.f32 %v1260, %v1484
  %v1541 = vadd.f32 %v1262, %v1486
  %v1542 = vadd.f32 %v1264, %v1488
  %v1543 = vadd.f32 %v1266, %v1490
  %v1544 = vadd.f32 %v1268, %v1492
  %v1545 = vadd.f32 %v1270, %v1494
  %v1546 = vadd.f32 %v1272, %v1496
  %v1547 = vadd.f32 %v1274, %v1498
  %v1548 = vadd.f32 %v1276, %v1500
  %v1549 = vadd.f32 %v1278, %v1502
  %v1550 = vadd.f32 %v1280, %v1504
  %v1551 = vadd.f32 %v1282, %v1506
  %v1552 = vadd.f32 %v1284, %v1508
  %v1553 = vadd.f32 %v1286, %v1510
  %v1554 = vadd.f32 %v1288, %v1512
  %v1555 = vadd.f32 %v1290, %v1514
  %v1556 = vadd.f32 %v1292, %v1516
  %v1557 = vadd.f32 %v1294, %v1518
  %v1558 = vadd.f32 %v1296, %v1520
  %v1559 = vadd.f32 %v1298, %v1522
  %v1560 = vadd.f32 %v1300, %v1524
  %v1561 = vadd.f32 %v1302, %v1526
  %v1562 = vadd.f32 %v1304, %v1528
  %v1563 = vadd.f32 %v1306, %v1530
  %v1564 = vadd.f32 %v1308, %v1532
  %v1565 = vsub.f32 %v1084, %v1533
  %v1566 = vsub.f32 %v1087, %v1534
  %v1567 = vsub.f32 %v1092, %v1535
  %v1568 = vsub.f32 %v1095, %v1536
  %v1569 = vsub.f32 %v1100, %v1537
  %v1570 = vsub.f32 %v1103, %v1538
  %v1571 = vsub.f32 %v1108, %v1539
  %v1572 = vsub.f32 %v1111, %v1540
  %v1573 = vsub.f32 %v1116, %v1541
  %v1574 = vsub.f32 %v1119, %v1542
  %v1575 = vsub.f32 %v1124, %v1543
  %v1576 = vsub.f32 %v1127, %v1544
  %v1577 = vsub.f32 %v1132, %v1545
  %v1578 = vsub.f32 %v1135, %v1546
  %v1579 = vsub.f32 %v1140, %v1547
  %v1580 = vsub.f32 %v1143, %v1548
  %v1581 = vsub.f32 %v1148, %v1549
  %v1582 = vsub.f32 %v1151, %v1550
  %v1583 = vsub.f32 %v1156, %v1551
  %v1584 = vsub.f32 %v1159, %v1552
  %v1585 = vsub.f32 %v1164, %v1553
  %v1586 = vsub.f32 %v1167, %v1554
  %v1587 = vsub.f32 %v1172, %v1555
  %v1588 = vsub.f32 %v1175, %v1556
  %v1589 = vsub.f32 %v1180, %v1557
  %v1590 = vsub.f32 %v1183, %v1558
  %v1591 = vsub.f32 %v1188, %v1559
  %v1592 = vsub.f32 %v1191, %v1560
  %v1593 = vsub.f32 %v1196, %v1561
  %v1594 = vsub.f32 %v1199, %v1562
  %v1595 = vsub.f32 %v1204, %v1563
  %v1596 = vsub.f32 %v1207, %v1564
  %1597 = vst [vmem:[%s6] sm:$0xff] %v1565
  %1598 = vst [vmem:[%s6 + $0x8] sm:$0xff] %v1566
  %1599 = vst [vmem:[%s6 + $0x10] sm:$0xff] %v1567
  %1600 = vst [vmem:[%s6 + $0x18] sm:$0xff] %v1568
  %1601 = vst [vmem:[%s6 + $0x20] sm:$0xff] %v1569
  %1602 = vst [vmem:[%s6 + $0x28] sm:$0xff] %v1570
  %1603 = vst [vmem:[%s6 + $0x30] sm:$0xff] %v1571
  %1604 = vst [vmem:[%s6 + $0x38] sm:$0xff] %v1572
  %1605 = vst [vmem:[%s6 + $0x40] sm:$0xff] %v1573
  %1606 = vst [vmem:[%s6 + $0x48] sm:$0xff] %v1574
  %1607 = vst [vmem:[%s6 + $0x50] sm:$0xff] %v1575
  %1608 = vst [vmem:[%s6 + $0x58] sm:$0xff] %v1576
  %1609 = vst [vmem:[%s6 + $0x60] sm:$0xff] %v1577
  %1610 = vst [vmem:[%s6 + $0x68] sm:$0xff] %v1578
  %1611 = vst [vmem:[%s6 + $0x70] sm:$0xff] %v1579
  %1612 = vst [vmem:[%s6 + $0x78] sm:$0xff] %v1580
  %1613 = vst [vmem:[%s6 + $0x80] sm:$0xff] %v1581
  %1614 = vst [vmem:[%s6 + $0x88] sm:$0xff] %v1582
  %1615 = vst [vmem:[%s6 + $0x90] sm:$0xff] %v1583
  %1616 = vst [vmem:[%s6 + $0x98] sm:$0xff] %v1584
  %1617 = vst [vmem:[%s6 + $0xa0] sm:$0xff] %v1585
  %1618 = vst [vmem:[%s6 + $0xa8] sm:$0xff] %v1586
  %1619 = vst [vmem:[%s6 + $0xb0] sm:$0xff] %v1587
  %1620 = vst [vmem:[%s6 + $0xb8] sm:$0xff] %v1588
  %1621 = vst [vmem:[%s6 + $0xc0] sm:$0xff] %v1589
  %1622 = vst [vmem:[%s6 + $0xc8] sm:$0xff] %v1590
  %1623 = vst [vmem:[%s6 + $0xd0] sm:$0xff] %v1591
  %1624 = vst [vmem:[%s6 + $0xd8] sm:$0xff] %v1592
  %1625 = vst [vmem:[%s6 + $0xe0] sm:$0xff] %v1593
  %1626 = vst [vmem:[%s6 + $0xe8] sm:$0xff] %v1594
  %1627 = vst [vmem:[%s6 + $0xf0] sm:$0xff] %v1595
  %1628 = vst [vmem:[%s6 + $0xf8] sm:$0xff] %v1596
  // Predicated region
  $region26: #{_lambda_.1} parent=0 // pred_check
    _
  $region27: #{_lambda_.1} parent=0 // pred_check_branch
    %1630 = sbr.rel (0) target = $region29
  $region28: #{_lambda_.1} parent=0 // pred_region
    _
  $region29: #{_lambda_.1} parent=0 // pred_fallthru
    _
  // Predicated region
  $region30: #{_lambda_.1} parent=0 // pred_check
    _
  $region31: #{_lambda_.1} parent=0 // pred_check_branch
    %1632 = sbr.rel (0) target = $region33
  $region32: #{_lambda_.1} parent=0 // pred_region
    _
  $region33: #{_lambda_.1} parent=0 // pred_fallthru
    _

</llo_original>
